<compile_context>
chip_gen: v6e
topology: v6e:2x2x1
jax: 0.10.0
libtpu: 0.0.40
codegen_flags: <defaults>
</compile_context>

<pallas_src>
import jax
import jax.numpy as jnp
from jax.experimental import pallas as pl
from jax.experimental.pallas import tpu as pltpu

K = 7                 # conv kernel size
P = (K - 1) // 2      # padding = 3
HALO = 8              # sublane-aligned halo (>= P) inside the VMEM slab


def basic_block_kernel(x_ref, w1_ref, g1_ref, b1_ref, w2_ref, g2_ref, b2_ref,
                       o_ref, xpad_ref, hpad_ref):
    # x_ref   : (TB, L, Cp)  f32 input block (channels already lane-padded)
    # w1_ref  : (K, Cp, Cp)  bf16
    # w2_ref  : (K, Cp, Cp)  bf16
    # g*/b*   : (1, Cp)      f32 folded BN scale / shift
    # o_ref   : (TB, L, Cp)  f32 output block
    # xpad_ref/hpad_ref : (TB, L + 2*HALO, Cp) bf16 VMEM slabs (halo-padded operands)
    TB, L, Cp = o_ref.shape
    M = TB * L

    # Zero only the halo bands (two aligned 8-row stores per slab); the interior
    # [HALO, HALO+L) band is fully overwritten every step.
    zero_band = jnp.zeros((TB, HALO, Cp), jnp.bfloat16)
    xpad_ref[:, 0:HALO, :] = zero_band
    xpad_ref[:, HALO + L:HALO + L + HALO, :] = zero_band
    hpad_ref[:, 0:HALO, :] = zero_band
    hpad_ref[:, HALO + L:HALO + L + HALO, :] = zero_band

    x = x_ref[...]                                      # (TB, L, Cp) f32 (residual)
    xpad_ref[:, HALO:HALO + L, :] = x.astype(jnp.bfloat16)   # aligned bulk store

    # ---- conv1: K shifted (M, Cp) @ (Cp, Cp) bf16 matmuls, f32 accumulation ----
    acc = jnp.zeros((M, Cp), jnp.float32)
    for k in range(K):
        s = HALO - P + k
        a = xpad_ref[:, s:s + L, :].reshape(M, Cp)
        acc = acc + jnp.dot(a, w1_ref[k], preferred_element_type=jnp.float32)

    # ---- bn1 + relu in f32 (dropout = identity in eval mode) ----
    h = jnp.maximum(acc * g1_ref[...] + b1_ref[...], 0.0)
    hpad_ref[:, HALO:HALO + L, :] = h.reshape(TB, L, Cp).astype(jnp.bfloat16)

    # ---- conv2: K shifted matmuls ----
    acc2 = jnp.zeros((M, Cp), jnp.float32)
    for k in range(K):
        s = HALO - P + k
        a = hpad_ref[:, s:s + L, :].reshape(M, Cp)
        acc2 = acc2 + jnp.dot(a, w2_ref[k], preferred_element_type=jnp.float32)

    # ---- bn2 + identity residual + relu (all f32) ----
    out = acc2 * g2_ref[...] + b2_ref[...] + x.reshape(M, Cp)
    out = jnp.maximum(out, 0.0)
    o_ref[...] = out.reshape(TB, L, Cp).astype(o_ref.dtype)


def basic_block(x_ncl, w1, w2, bn1, bn2, eps=1e-5):
    """x_ncl: (N, C, L) float32. w*: (Cout, Cin, K) PyTorch conv1d weights.
       bn*: dict(gamma, beta, mean, var) each (C,). Eval-mode forward."""
    N, Cin, L = x_ncl.shape
    Cout = w1.shape[0]
    assert Cin == Cout, "downsample=None requires inplanes == planes"
    assert w1.shape[2] == K and w2.shape[2] == K

    LANE = 128
    Cp = ((Cout + LANE - 1) // LANE) * LANE   # lane-dense channel count

    # ---- glue: layout & parameter folding (plain JAX) ----
    x_nlc = jnp.transpose(x_ncl, (0, 2, 1)).astype(jnp.float32)      # (N, L, C)
    if Cp != Cin:
        x_nlc = jnp.pad(x_nlc, ((0, 0), (0, 0), (0, Cp - Cin)))      # zero pad lanes

    def prep_w(w):
        wt = jnp.transpose(w, (2, 1, 0)).astype(jnp.float32)         # (K, Cin, Cout)
        wt = jnp.pad(wt, ((0, 0), (0, Cp - Cin), (0, Cp - Cout)))
        return wt.astype(jnp.bfloat16)                               # MXU operand

    w1_t = prep_w(w1)
    w2_t = prep_w(w2)

    def fold(bn):
        scale = bn["gamma"] / jnp.sqrt(bn["var"] + eps)
        shift = bn["beta"] - bn["mean"] * scale
        scale = jnp.pad(scale.astype(jnp.float32), (0, Cp - Cout)).reshape(1, Cp)
        shift = jnp.pad(shift.astype(jnp.float32), (0, Cp - Cout)).reshape(1, Cp)
        return scale, shift

    g1, b1 = fold(bn1)
    g2, b2 = fold(bn2)

    # Fold several batch elements per grid step (largest divisor of N up to 8).
    TB = 1
    for t in range(min(N, 8), 0, -1):
        if N % t == 0:
            TB = t
            break
    grid = (N // TB,)

    const3 = lambda n: (0, 0, 0)
    const2 = lambda n: (0, 0)

    cost = pl.CostEstimate(
        flops=int(4 * N * L * K * Cp * Cp),                 # 2 convs * 2*M*Kc
        transcendentals=0,
        bytes_accessed=int(x_nlc.size * 4 + N * L * Cp * 4
                           + (w1_t.size + w2_t.size) * 2 + 4 * Cp * 4),
    )

    out_nlc = pl.pallas_call(
        basic_block_kernel,
        out_shape=jax.ShapeDtypeStruct((N, L, Cp), jnp.float32),
        grid_spec=pltpu.PrefetchScalarGridSpec(
            num_scalar_prefetch=0,
            grid=grid,
            in_specs=[
                pl.BlockSpec((TB, L, Cp), lambda n: (n, 0, 0)),   # x (f32, unpadded L)
                pl.BlockSpec((K, Cp, Cp), const3),                # w1 (bf16)
                pl.BlockSpec((1, Cp), const2),                    # bn1 scale
                pl.BlockSpec((1, Cp), const2),                    # bn1 shift
                pl.BlockSpec((K, Cp, Cp), const3),                # w2 (bf16)
                pl.BlockSpec((1, Cp), const2),                    # bn2 scale
                pl.BlockSpec((1, Cp), const2),                    # bn2 shift
            ],
            out_specs=pl.BlockSpec((TB, L, Cp), lambda n: (n, 0, 0)),
            scratch_shapes=[
                pltpu.VMEM((TB, L + 2 * HALO, Cp), jnp.bfloat16),  # xpad slab
                pltpu.VMEM((TB, L + 2 * HALO, Cp), jnp.bfloat16),  # hpad slab
            ],
        ),
        compiler_params=pltpu.CompilerParams(
            dimension_semantics=("parallel",),
            vmem_limit_bytes=48 * 1024 * 1024,
        ),
        cost_estimate=cost,
    )(x_nlc, w1_t, g1, b1, w2_t, g2, b2)

    out = out_nlc[:, :, :Cout]                   # drop lane padding
    return jnp.transpose(out, (0, 2, 1))         # back to NCL


def _reference(x_ncl, w1, w2, bn1, bn2, eps=1e-5):
    """Pure-JAX f32 reference (eval-mode semantics), NCL layout like PyTorch."""
    dn = jax.lax.conv_dimension_numbers(x_ncl.shape, w1.shape, ("NCH", "OIH", "NCH"))

    def conv(x, w):
        return jax.lax.conv_general_dilated(x, w, window_strides=(1,),
                                            padding=((P, P),), dimension_numbers=dn)

    def bn(x, p):
        s = p["gamma"] / jnp.sqrt(p["var"] + eps)
        t = p["beta"] - p["mean"] * s
        return x * s[None, :, None] + t[None, :, None]

    out = jax.nn.relu(bn(conv(x_ncl, w1), bn1))
    out = bn(conv(out, w2), bn2)
    return jax.nn.relu(out + x_ncl)


if __name__ == "__main__":
    N, C, L = 2, 4, 16   # inplanes = planes = 4, stride = 1, downsample = None
    key = jax.random.PRNGKey(0)
    kx, k1, k2 = jax.random.split(key, 3)

    x = jax.random.normal(kx, (N, C, L), dtype=jnp.float32)
    w1 = jax.random.normal(k1, (C, C, K), dtype=jnp.float32) * 0.1
    w2 = jax.random.normal(k2, (C, C, K), dtype=jnp.float32) * 0.1
    bn1 = dict(gamma=jnp.ones((C,), jnp.float32), beta=jnp.zeros((C,), jnp.float32),
               mean=jnp.zeros((C,), jnp.float32), var=jnp.ones((C,), jnp.float32))
    bn2 = dict(gamma=jnp.ones((C,), jnp.float32), beta=jnp.zeros((C,), jnp.float32),
               mean=jnp.zeros((C,), jnp.float32), var=jnp.ones((C,), jnp.float32))

    out = basic_block(x, w1, w2, bn1, bn2)
    out = jax.block_until_ready(out)

    ref = _reference(x, w1, w2, bn1, bn2)
    assert out.shape == (N, C, L)
    # bf16 MXU operands (f32 accumulation) -> loosened tolerance vs the f32 reference.
    assert jnp.allclose(out, ref, atol=2e-2, rtol=2e-2), "mismatch vs JAX reference"

    print("KERNEL_OK")
</pallas_src>

<mosaic_0001>
module attributes {stable_mosaic.version = 11 : i64} {
  func.func @basic_block_kernel(%arg0: i32, %arg1: memref<2x16x128xf32, #tpu.memory_space<vmem>>, %arg2: memref<7x128x128xbf16, #tpu.memory_space<vmem>>, %arg3: memref<1x128xf32, #tpu.memory_space<vmem>>, %arg4: memref<1x128xf32, #tpu.memory_space<vmem>>, %arg5: memref<7x128x128xbf16, #tpu.memory_space<vmem>>, %arg6: memref<1x128xf32, #tpu.memory_space<vmem>>, %arg7: memref<1x128xf32, #tpu.memory_space<vmem>>, %arg8: memref<2x16x128xf32, #tpu.memory_space<vmem>>, %arg9: memref<2x32x128xbf16, #tpu.memory_space<vmem>>, %arg10: memref<2x32x128xbf16, #tpu.memory_space<vmem>>) attributes {dimension_semantics = [#tpu.dimension_semantics<parallel>], iteration_bounds = array<i64: 1>, scalar_prefetch = 0 : i64, scratch_operands = 2 : i64, tpu.core_type = #tpu.core_type<tc>, window_params = [{transform_indices = @transform_0, window_bounds = array<i64: 2, 16, 128>}, {pipeline_mode = #tpu.pipeline_mode<synchronous>, transform_indices = @transform_1, window_bounds = array<i64: 7, 128, 128>}, {pipeline_mode = #tpu.pipeline_mode<synchronous>, transform_indices = @transform_2, window_bounds = array<i64: 1, 128>}, {pipeline_mode = #tpu.pipeline_mode<synchronous>, transform_indices = @transform_3, window_bounds = array<i64: 1, 128>}, {pipeline_mode = #tpu.pipeline_mode<synchronous>, transform_indices = @transform_4, window_bounds = array<i64: 7, 128, 128>}, {pipeline_mode = #tpu.pipeline_mode<synchronous>, transform_indices = @transform_5, window_bounds = array<i64: 1, 128>}, {pipeline_mode = #tpu.pipeline_mode<synchronous>, transform_indices = @transform_6, window_bounds = array<i64: 1, 128>}, {transform_indices = @transform_7, window_bounds = array<i64: 2, 16, 128>}]} {
    %cst = arith.constant 0.000000e+00 : bf16
    %0 = vector.broadcast %cst : bf16 to vector<2x8x128xbf16>
    %c0 = arith.constant 0 : index
    %c0_0 = arith.constant 0 : index
    %c0_1 = arith.constant 0 : index
    %1 = vector.load %arg9[%c0, %c0_0, %c0_1] : memref<2x32x128xbf16, #tpu.memory_space<vmem>>, vector<2x8x128xbf16>
    tpu.vector_store %arg9[%c0, %c0_0, %c0_1], %0 {strides = array<i32>} : memref<2x32x128xbf16, #tpu.memory_space<vmem>>, vector<2x8x128xbf16>,
    %c0_2 = arith.constant 0 : index
    %c24 = arith.constant 24 : index
    %c0_3 = arith.constant 0 : index
    %2 = vector.load %arg9[%c0_2, %c24, %c0_3] : memref<2x32x128xbf16, #tpu.memory_space<vmem>>, vector<2x8x128xbf16>
    tpu.vector_store %arg9[%c0_2, %c24, %c0_3], %0 {strides = array<i32>} : memref<2x32x128xbf16, #tpu.memory_space<vmem>>, vector<2x8x128xbf16>,
    %c0_4 = arith.constant 0 : index
    %c0_5 = arith.constant 0 : index
    %c0_6 = arith.constant 0 : index
    %3 = vector.load %arg10[%c0_4, %c0_5, %c0_6] : memref<2x32x128xbf16, #tpu.memory_space<vmem>>, vector<2x8x128xbf16>
    tpu.vector_store %arg10[%c0_4, %c0_5, %c0_6], %0 {strides = array<i32>} : memref<2x32x128xbf16, #tpu.memory_space<vmem>>, vector<2x8x128xbf16>,
    %c0_7 = arith.constant 0 : index
    %c24_8 = arith.constant 24 : index
    %c0_9 = arith.constant 0 : index
    %4 = vector.load %arg10[%c0_7, %c24_8, %c0_9] : memref<2x32x128xbf16, #tpu.memory_space<vmem>>, vector<2x8x128xbf16>
    tpu.vector_store %arg10[%c0_7, %c24_8, %c0_9], %0 {strides = array<i32>} : memref<2x32x128xbf16, #tpu.memory_space<vmem>>, vector<2x8x128xbf16>,
    %c0_10 = arith.constant 0 : index
    %c0_11 = arith.constant 0 : index
    %c0_12 = arith.constant 0 : index
    %5 = vector.load %arg1[%c0_10, %c0_11, %c0_12] : memref<2x16x128xf32, #tpu.memory_space<vmem>>, vector<2x16x128xf32>
    %6 = arith.truncf %5 : vector<2x16x128xf32> to vector<2x16x128xbf16>
    %c0_13 = arith.constant 0 : index
    %c8 = arith.constant 8 : index
    %c0_14 = arith.constant 0 : index
    %7 = vector.load %arg9[%c0_13, %c8, %c0_14] : memref<2x32x128xbf16, #tpu.memory_space<vmem>>, vector<2x16x128xbf16>
    tpu.vector_store %arg9[%c0_13, %c8, %c0_14], %6 {strides = array<i32>} : memref<2x32x128xbf16, #tpu.memory_space<vmem>>, vector<2x16x128xbf16>,
    %cst_15 = arith.constant 0.000000e+00 : f32
    %8 = vector.broadcast %cst_15 : f32 to vector<32x128xf32>
    %c0_16 = arith.constant 0 : index
    %c5 = arith.constant 5 : index
    %c0_17 = arith.constant 0 : index
    %9 = vector.load %arg9[%c0_16, %c5, %c0_17] : memref<2x32x128xbf16, #tpu.memory_space<vmem>>, vector<2x16x128xbf16>
    %10 = vector.shape_cast %9 : vector<2x16x128xbf16> to vector<32x128xbf16>
    %c0_18 = arith.constant 0 : index
    %c0_19 = arith.constant 0 : index
    %c0_20 = arith.constant 0 : index
    %11 = vector.load %arg2[%c0_18, %c0_19, %c0_20] : memref<7x128x128xbf16, #tpu.memory_space<vmem>>, vector<1x128x128xbf16>
    %12 = vector.shape_cast %11 : vector<1x128x128xbf16> to vector<128x128xbf16>
    %cst_21 = arith.constant dense<0.000000e+00> : vector<32x128xf32>
    %13 = tpu.matmul %10, %12, %cst_21 {dimension_numbers = #tpu.dot_dimension_numbers<[1], [0], [0], [1], [0, 0, 1, 1], [], []>} : vector<32x128xbf16>, vector<128x128xbf16>, vector<32x128xf32> -> vector<32x128xf32>
    %14 = arith.addf %8, %13 : vector<32x128xf32>
    %c0_22 = arith.constant 0 : index
    %c6 = arith.constant 6 : index
    %c0_23 = arith.constant 0 : index
    %15 = vector.load %arg9[%c0_22, %c6, %c0_23] : memref<2x32x128xbf16, #tpu.memory_space<vmem>>, vector<2x16x128xbf16>
    %16 = vector.shape_cast %15 : vector<2x16x128xbf16> to vector<32x128xbf16>
    %c1 = arith.constant 1 : index
    %c0_24 = arith.constant 0 : index
    %c0_25 = arith.constant 0 : index
    %17 = vector.load %arg2[%c1, %c0_24, %c0_25] : memref<7x128x128xbf16, #tpu.memory_space<vmem>>, vector<1x128x128xbf16>
    %18 = vector.shape_cast %17 : vector<1x128x128xbf16> to vector<128x128xbf16>
    %cst_26 = arith.constant dense<0.000000e+00> : vector<32x128xf32>
    %19 = tpu.matmul %16, %18, %cst_26 {dimension_numbers = #tpu.dot_dimension_numbers<[1], [0], [0], [1], [0, 0, 1, 1], [], []>} : vector<32x128xbf16>, vector<128x128xbf16>, vector<32x128xf32> -> vector<32x128xf32>
    %20 = arith.addf %14, %19 : vector<32x128xf32>
    %c0_27 = arith.constant 0 : index
    %c7 = arith.constant 7 : index
    %c0_28 = arith.constant 0 : index
    %21 = vector.load %arg9[%c0_27, %c7, %c0_28] : memref<2x32x128xbf16, #tpu.memory_space<vmem>>, vector<2x16x128xbf16>
    %22 = vector.shape_cast %21 : vector<2x16x128xbf16> to vector<32x128xbf16>
    %c2 = arith.constant 2 : index
    %c0_29 = arith.constant 0 : index
    %c0_30 = arith.constant 0 : index
    %23 = vector.load %arg2[%c2, %c0_29, %c0_30] : memref<7x128x128xbf16, #tpu.memory_space<vmem>>, vector<1x128x128xbf16>
    %24 = vector.shape_cast %23 : vector<1x128x128xbf16> to vector<128x128xbf16>
    %cst_31 = arith.constant dense<0.000000e+00> : vector<32x128xf32>
    %25 = tpu.matmul %22, %24, %cst_31 {dimension_numbers = #tpu.dot_dimension_numbers<[1], [0], [0], [1], [0, 0, 1, 1], [], []>} : vector<32x128xbf16>, vector<128x128xbf16>, vector<32x128xf32> -> vector<32x128xf32>
    %26 = arith.addf %20, %25 : vector<32x128xf32>
    %c0_32 = arith.constant 0 : index
    %c8_33 = arith.constant 8 : index
    %c0_34 = arith.constant 0 : index
    %27 = vector.load %arg9[%c0_32, %c8_33, %c0_34] : memref<2x32x128xbf16, #tpu.memory_space<vmem>>, vector<2x16x128xbf16>
    %28 = vector.shape_cast %27 : vector<2x16x128xbf16> to vector<32x128xbf16>
    %c3 = arith.constant 3 : index
    %c0_35 = arith.constant 0 : index
    %c0_36 = arith.constant 0 : index
    %29 = vector.load %arg2[%c3, %c0_35, %c0_36] : memref<7x128x128xbf16, #tpu.memory_space<vmem>>, vector<1x128x128xbf16>
    %30 = vector.shape_cast %29 : vector<1x128x128xbf16> to vector<128x128xbf16>
    %cst_37 = arith.constant dense<0.000000e+00> : vector<32x128xf32>
    %31 = tpu.matmul %28, %30, %cst_37 {dimension_numbers = #tpu.dot_dimension_numbers<[1], [0], [0], [1], [0, 0, 1, 1], [], []>} : vector<32x128xbf16>, vector<128x128xbf16>, vector<32x128xf32> -> vector<32x128xf32>
    %32 = arith.addf %26, %31 : vector<32x128xf32>
    %c0_38 = arith.constant 0 : index
    %c9 = arith.constant 9 : index
    %c0_39 = arith.constant 0 : index
    %33 = vector.load %arg9[%c0_38, %c9, %c0_39] : memref<2x32x128xbf16, #tpu.memory_space<vmem>>, vector<2x16x128xbf16>
    %34 = vector.shape_cast %33 : vector<2x16x128xbf16> to vector<32x128xbf16>
    %c4 = arith.constant 4 : index
    %c0_40 = arith.constant 0 : index
    %c0_41 = arith.constant 0 : index
    %35 = vector.load %arg2[%c4, %c0_40, %c0_41] : memref<7x128x128xbf16, #tpu.memory_space<vmem>>, vector<1x128x128xbf16>
    %36 = vector.shape_cast %35 : vector<1x128x128xbf16> to vector<128x128xbf16>
    %cst_42 = arith.constant dense<0.000000e+00> : vector<32x128xf32>
    %37 = tpu.matmul %34, %36, %cst_42 {dimension_numbers = #tpu.dot_dimension_numbers<[1], [0], [0], [1], [0, 0, 1, 1], [], []>} : vector<32x128xbf16>, vector<128x128xbf16>, vector<32x128xf32> -> vector<32x128xf32>
    %38 = arith.addf %32, %37 : vector<32x128xf32>
    %c0_43 = arith.constant 0 : index
    %c10 = arith.constant 10 : index
    %c0_44 = arith.constant 0 : index
    %39 = vector.load %arg9[%c0_43, %c10, %c0_44] : memref<2x32x128xbf16, #tpu.memory_space<vmem>>, vector<2x16x128xbf16>
    %40 = vector.shape_cast %39 : vector<2x16x128xbf16> to vector<32x128xbf16>
    %c5_45 = arith.constant 5 : index
    %c0_46 = arith.constant 0 : index
    %c0_47 = arith.constant 0 : index
    %41 = vector.load %arg2[%c5_45, %c0_46, %c0_47] : memref<7x128x128xbf16, #tpu.memory_space<vmem>>, vector<1x128x128xbf16>
    %42 = vector.shape_cast %41 : vector<1x128x128xbf16> to vector<128x128xbf16>
    %cst_48 = arith.constant dense<0.000000e+00> : vector<32x128xf32>
    %43 = tpu.matmul %40, %42, %cst_48 {dimension_numbers = #tpu.dot_dimension_numbers<[1], [0], [0], [1], [0, 0, 1, 1], [], []>} : vector<32x128xbf16>, vector<128x128xbf16>, vector<32x128xf32> -> vector<32x128xf32>
    %44 = arith.addf %38, %43 : vector<32x128xf32>
    %c0_49 = arith.constant 0 : index
    %c11 = arith.constant 11 : index
    %c0_50 = arith.constant 0 : index
    %45 = vector.load %arg9[%c0_49, %c11, %c0_50] : memref<2x32x128xbf16, #tpu.memory_space<vmem>>, vector<2x16x128xbf16>
    %46 = vector.shape_cast %45 : vector<2x16x128xbf16> to vector<32x128xbf16>
    %c6_51 = arith.constant 6 : index
    %c0_52 = arith.constant 0 : index
    %c0_53 = arith.constant 0 : index
    %47 = vector.load %arg2[%c6_51, %c0_52, %c0_53] : memref<7x128x128xbf16, #tpu.memory_space<vmem>>, vector<1x128x128xbf16>
    %48 = vector.shape_cast %47 : vector<1x128x128xbf16> to vector<128x128xbf16>
    %cst_54 = arith.constant dense<0.000000e+00> : vector<32x128xf32>
    %49 = tpu.matmul %46, %48, %cst_54 {dimension_numbers = #tpu.dot_dimension_numbers<[1], [0], [0], [1], [0, 0, 1, 1], [], []>} : vector<32x128xbf16>, vector<128x128xbf16>, vector<32x128xf32> -> vector<32x128xf32>
    %50 = arith.addf %44, %49 : vector<32x128xf32>
    %c0_55 = arith.constant 0 : index
    %c0_56 = arith.constant 0 : index
    %51 = vector.load %arg3[%c0_55, %c0_56] : memref<1x128xf32, #tpu.memory_space<vmem>>, vector<1x128xf32>
    %52 = vector.broadcast %51 : vector<1x128xf32> to vector<32x128xf32>
    %53 = arith.mulf %50, %52 : vector<32x128xf32>
    %c0_57 = arith.constant 0 : index
    %c0_58 = arith.constant 0 : index
    %54 = vector.load %arg4[%c0_57, %c0_58] : memref<1x128xf32, #tpu.memory_space<vmem>>, vector<1x128xf32>
    %55 = vector.broadcast %54 : vector<1x128xf32> to vector<32x128xf32>
    %56 = arith.addf %53, %55 : vector<32x128xf32>
    %cst_59 = arith.constant 0.000000e+00 : f32
    %57 = vector.broadcast %cst_59 : f32 to vector<32x128xf32>
    %58 = arith.maximumf %56, %57 : vector<32x128xf32>
    %59 = vector.shape_cast %58 : vector<32x128xf32> to vector<2x16x128xf32>
    %60 = arith.truncf %59 : vector<2x16x128xf32> to vector<2x16x128xbf16>
    %c0_60 = arith.constant 0 : index
    %c8_61 = arith.constant 8 : index
    %c0_62 = arith.constant 0 : index
    %61 = vector.load %arg10[%c0_60, %c8_61, %c0_62] : memref<2x32x128xbf16, #tpu.memory_space<vmem>>, vector<2x16x128xbf16>
    tpu.vector_store %arg10[%c0_60, %c8_61, %c0_62], %60 {strides = array<i32>} : memref<2x32x128xbf16, #tpu.memory_space<vmem>>, vector<2x16x128xbf16>,
    %cst_63 = arith.constant 0.000000e+00 : f32
    %62 = vector.broadcast %cst_63 : f32 to vector<32x128xf32>
    %c0_64 = arith.constant 0 : index
    %c5_65 = arith.constant 5 : index
    %c0_66 = arith.constant 0 : index
    %63 = vector.load %arg10[%c0_64, %c5_65, %c0_66] : memref<2x32x128xbf16, #tpu.memory_space<vmem>>, vector<2x16x128xbf16>
    %64 = vector.shape_cast %63 : vector<2x16x128xbf16> to vector<32x128xbf16>
    %c0_67 = arith.constant 0 : index
    %c0_68 = arith.constant 0 : index
    %c0_69 = arith.constant 0 : index
    %65 = vector.load %arg5[%c0_67, %c0_68, %c0_69] : memref<7x128x128xbf16, #tpu.memory_space<vmem>>, vector<1x128x128xbf16>
    %66 = vector.shape_cast %65 : vector<1x128x128xbf16> to vector<128x128xbf16>
    %cst_70 = arith.constant dense<0.000000e+00> : vector<32x128xf32>
    %67 = tpu.matmul %64, %66, %cst_70 {dimension_numbers = #tpu.dot_dimension_numbers<[1], [0], [0], [1], [0, 0, 1, 1], [], []>} : vector<32x128xbf16>, vector<128x128xbf16>, vector<32x128xf32> -> vector<32x128xf32>
    %68 = arith.addf %62, %67 : vector<32x128xf32>
    %c0_71 = arith.constant 0 : index
    %c6_72 = arith.constant 6 : index
    %c0_73 = arith.constant 0 : index
    %69 = vector.load %arg10[%c0_71, %c6_72, %c0_73] : memref<2x32x128xbf16, #tpu.memory_space<vmem>>, vector<2x16x128xbf16>
    %70 = vector.shape_cast %69 : vector<2x16x128xbf16> to vector<32x128xbf16>
    %c1_74 = arith.constant 1 : index
    %c0_75 = arith.constant 0 : index
    %c0_76 = arith.constant 0 : index
    %71 = vector.load %arg5[%c1_74, %c0_75, %c0_76] : memref<7x128x128xbf16, #tpu.memory_space<vmem>>, vector<1x128x128xbf16>
    %72 = vector.shape_cast %71 : vector<1x128x128xbf16> to vector<128x128xbf16>
    %cst_77 = arith.constant dense<0.000000e+00> : vector<32x128xf32>
    %73 = tpu.matmul %70, %72, %cst_77 {dimension_numbers = #tpu.dot_dimension_numbers<[1], [0], [0], [1], [0, 0, 1, 1], [], []>} : vector<32x128xbf16>, vector<128x128xbf16>, vector<32x128xf32> -> vector<32x128xf32>
    %74 = arith.addf %68, %73 : vector<32x128xf32>
    %c0_78 = arith.constant 0 : index
    %c7_79 = arith.constant 7 : index
    %c0_80 = arith.constant 0 : index
    %75 = vector.load %arg10[%c0_78, %c7_79, %c0_80] : memref<2x32x128xbf16, #tpu.memory_space<vmem>>, vector<2x16x128xbf16>
    %76 = vector.shape_cast %75 : vector<2x16x128xbf16> to vector<32x128xbf16>
    %c2_81 = arith.constant 2 : index
    %c0_82 = arith.constant 0 : index
    %c0_83 = arith.constant 0 : index
    %77 = vector.load %arg5[%c2_81, %c0_82, %c0_83] : memref<7x128x128xbf16, #tpu.memory_space<vmem>>, vector<1x128x128xbf16>
    %78 = vector.shape_cast %77 : vector<1x128x128xbf16> to vector<128x128xbf16>
    %cst_84 = arith.constant dense<0.000000e+00> : vector<32x128xf32>
    %79 = tpu.matmul %76, %78, %cst_84 {dimension_numbers = #tpu.dot_dimension_numbers<[1], [0], [0], [1], [0, 0, 1, 1], [], []>} : vector<32x128xbf16>, vector<128x128xbf16>, vector<32x128xf32> -> vector<32x128xf32>
    %80 = arith.addf %74, %79 : vector<32x128xf32>
    %c0_85 = arith.constant 0 : index
    %c8_86 = arith.constant 8 : index
    %c0_87 = arith.constant 0 : index
    %81 = vector.load %arg10[%c0_85, %c8_86, %c0_87] : memref<2x32x128xbf16, #tpu.memory_space<vmem>>, vector<2x16x128xbf16>
    %82 = vector.shape_cast %81 : vector<2x16x128xbf16> to vector<32x128xbf16>
    %c3_88 = arith.constant 3 : index
    %c0_89 = arith.constant 0 : index
    %c0_90 = arith.constant 0 : index
    %83 = vector.load %arg5[%c3_88, %c0_89, %c0_90] : memref<7x128x128xbf16, #tpu.memory_space<vmem>>, vector<1x128x128xbf16>
    %84 = vector.shape_cast %83 : vector<1x128x128xbf16> to vector<128x128xbf16>
    %cst_91 = arith.constant dense<0.000000e+00> : vector<32x128xf32>
    %85 = tpu.matmul %82, %84, %cst_91 {dimension_numbers = #tpu.dot_dimension_numbers<[1], [0], [0], [1], [0, 0, 1, 1], [], []>} : vector<32x128xbf16>, vector<128x128xbf16>, vector<32x128xf32> -> vector<32x128xf32>
    %86 = arith.addf %80, %85 : vector<32x128xf32>
    %c0_92 = arith.constant 0 : index
    %c9_93 = arith.constant 9 : index
    %c0_94 = arith.constant 0 : index
    %87 = vector.load %arg10[%c0_92, %c9_93, %c0_94] : memref<2x32x128xbf16, #tpu.memory_space<vmem>>, vector<2x16x128xbf16>
    %88 = vector.shape_cast %87 : vector<2x16x128xbf16> to vector<32x128xbf16>
    %c4_95 = arith.constant 4 : index
    %c0_96 = arith.constant 0 : index
    %c0_97 = arith.constant 0 : index
    %89 = vector.load %arg5[%c4_95, %c0_96, %c0_97] : memref<7x128x128xbf16, #tpu.memory_space<vmem>>, vector<1x128x128xbf16>
    %90 = vector.shape_cast %89 : vector<1x128x128xbf16> to vector<128x128xbf16>
    %cst_98 = arith.constant dense<0.000000e+00> : vector<32x128xf32>
    %91 = tpu.matmul %88, %90, %cst_98 {dimension_numbers = #tpu.dot_dimension_numbers<[1], [0], [0], [1], [0, 0, 1, 1], [], []>} : vector<32x128xbf16>, vector<128x128xbf16>, vector<32x128xf32> -> vector<32x128xf32>
    %92 = arith.addf %86, %91 : vector<32x128xf32>
    %c0_99 = arith.constant 0 : index
    %c10_100 = arith.constant 10 : index
    %c0_101 = arith.constant 0 : index
    %93 = vector.load %arg10[%c0_99, %c10_100, %c0_101] : memref<2x32x128xbf16, #tpu.memory_space<vmem>>, vector<2x16x128xbf16>
    %94 = vector.shape_cast %93 : vector<2x16x128xbf16> to vector<32x128xbf16>
    %c5_102 = arith.constant 5 : index
    %c0_103 = arith.constant 0 : index
    %c0_104 = arith.constant 0 : index
    %95 = vector.load %arg5[%c5_102, %c0_103, %c0_104] : memref<7x128x128xbf16, #tpu.memory_space<vmem>>, vector<1x128x128xbf16>
    %96 = vector.shape_cast %95 : vector<1x128x128xbf16> to vector<128x128xbf16>
    %cst_105 = arith.constant dense<0.000000e+00> : vector<32x128xf32>
    %97 = tpu.matmul %94, %96, %cst_105 {dimension_numbers = #tpu.dot_dimension_numbers<[1], [0], [0], [1], [0, 0, 1, 1], [], []>} : vector<32x128xbf16>, vector<128x128xbf16>, vector<32x128xf32> -> vector<32x128xf32>
    %98 = arith.addf %92, %97 : vector<32x128xf32>
    %c0_106 = arith.constant 0 : index
    %c11_107 = arith.constant 11 : index
    %c0_108 = arith.constant 0 : index
    %99 = vector.load %arg10[%c0_106, %c11_107, %c0_108] : memref<2x32x128xbf16, #tpu.memory_space<vmem>>, vector<2x16x128xbf16>
    %100 = vector.shape_cast %99 : vector<2x16x128xbf16> to vector<32x128xbf16>
    %c6_109 = arith.constant 6 : index
    %c0_110 = arith.constant 0 : index
    %c0_111 = arith.constant 0 : index
    %101 = vector.load %arg5[%c6_109, %c0_110, %c0_111] : memref<7x128x128xbf16, #tpu.memory_space<vmem>>, vector<1x128x128xbf16>
    %102 = vector.shape_cast %101 : vector<1x128x128xbf16> to vector<128x128xbf16>
    %cst_112 = arith.constant dense<0.000000e+00> : vector<32x128xf32>
    %103 = tpu.matmul %100, %102, %cst_112 {dimension_numbers = #tpu.dot_dimension_numbers<[1], [0], [0], [1], [0, 0, 1, 1], [], []>} : vector<32x128xbf16>, vector<128x128xbf16>, vector<32x128xf32> -> vector<32x128xf32>
    %104 = arith.addf %98, %103 : vector<32x128xf32>
    %c0_113 = arith.constant 0 : index
    %c0_114 = arith.constant 0 : index
    %105 = vector.load %arg6[%c0_113, %c0_114] : memref<1x128xf32, #tpu.memory_space<vmem>>, vector<1x128xf32>
    %106 = vector.broadcast %105 : vector<1x128xf32> to vector<32x128xf32>
    %107 = arith.mulf %104, %106 : vector<32x128xf32>
    %c0_115 = arith.constant 0 : index
    %c0_116 = arith.constant 0 : index
    %108 = vector.load %arg7[%c0_115, %c0_116] : memref<1x128xf32, #tpu.memory_space<vmem>>, vector<1x128xf32>
    %109 = vector.broadcast %108 : vector<1x128xf32> to vector<32x128xf32>
    %110 = arith.addf %107, %109 : vector<32x128xf32>
    %111 = vector.shape_cast %5 : vector<2x16x128xf32> to vector<32x128xf32>
    %112 = arith.addf %110, %111 : vector<32x128xf32>
    %cst_117 = arith.constant 0.000000e+00 : f32
    %113 = vector.broadcast %cst_117 : f32 to vector<32x128xf32>
    %114 = arith.maximumf %112, %113 : vector<32x128xf32>
    %115 = vector.shape_cast %114 : vector<32x128xf32> to vector<2x16x128xf32>
    %c0_118 = arith.constant 0 : index
    %c0_119 = arith.constant 0 : index
    %c0_120 = arith.constant 0 : index
    %116 = vector.load %arg8[%c0_118, %c0_119, %c0_120] : memref<2x16x128xf32, #tpu.memory_space<vmem>>, vector<2x16x128xf32>
    tpu.vector_store %arg8[%c0_118, %c0_119, %c0_120], %115 {strides = array<i32>} : memref<2x16x128xf32, #tpu.memory_space<vmem>>, vector<2x16x128xf32>,
    return
  }
  func.func @transform_0(%arg0: i32) -> (i32, i32, i32) {
    %c0_i32 = arith.constant 0 : i32
    %c0_i32_0 = arith.constant 0 : i32
    %c0_i32_1 = arith.constant 0 : i32
    return %arg0, %c0_i32, %c0_i32_0 : i32, i32, i32
  }
  func.func @transform_1(%arg0: i32) -> (i32, i32, i32) {
    %c0_i32 = arith.constant 0 : i32
    %c0_i32_0 = arith.constant 0 : i32
    %c0_i32_1 = arith.constant 0 : i32
    %c0_i32_2 = arith.constant 0 : i32
    return %c0_i32, %c0_i32_0, %c0_i32_1 : i32, i32, i32
  }
  func.func @transform_2(%arg0: i32) -> (i32, i32) {
    %c0_i32 = arith.constant 0 : i32
    %c0_i32_0 = arith.constant 0 : i32
    %c0_i32_1 = arith.constant 0 : i32
    return %c0_i32, %c0_i32_0 : i32, i32
  }
  func.func @transform_3(%arg0: i32) -> (i32, i32) {
    %c0_i32 = arith.constant 0 : i32
    %c0_i32_0 = arith.constant 0 : i32
    %c0_i32_1 = arith.constant 0 : i32
    return %c0_i32, %c0_i32_0 : i32, i32
  }
  func.func @transform_4(%arg0: i32) -> (i32, i32, i32) {
    %c0_i32 = arith.constant 0 : i32
    %c0_i32_0 = arith.constant 0 : i32
    %c0_i32_1 = arith.constant 0 : i32
    %c0_i32_2 = arith.constant 0 : i32
    return %c0_i32, %c0_i32_0, %c0_i32_1 : i32, i32, i32
  }
  func.func @transform_5(%arg0: i32) -> (i32, i32) {
    %c0_i32 = arith.constant 0 : i32
    %c0_i32_0 = arith.constant 0 : i32
    %c0_i32_1 = arith.constant 0 : i32
    return %c0_i32, %c0_i32_0 : i32, i32
  }
  func.func @transform_6(%arg0: i32) -> (i32, i32) {
    %c0_i32 = arith.constant 0 : i32
    %c0_i32_0 = arith.constant 0 : i32
    %c0_i32_1 = arith.constant 0 : i32
    return %c0_i32, %c0_i32_0 : i32, i32
  }
  func.func @transform_7(%arg0: i32) -> (i32, i32, i32) {
    %c0_i32 = arith.constant 0 : i32
    %c0_i32_0 = arith.constant 0 : i32
    %c0_i32_1 = arith.constant 0 : i32
    return %arg0, %c0_i32, %c0_i32_0 : i32, i32, i32
  }
}

</mosaic_0001>

<llo_original>
// kernel: tpu_custom_call.1
$region0: #{tpu_custom_call.1}
  #allocation0 [shape = 'u32[]', space=smem, size = 0x4, offset = 0x4, fixed_abs, tag = 'smem constant byte address 0x4 - core index']
  #allocation1 [shape = 'u32[144,128]{1,0:T(1,128)}', space=vmem, size = 0x12000, scoped, tag = 'internal scratch']
  #allocation2 [shape = 'bf16[2,32,128]{2,1,0:T(8,128)(2,1)}', space=vmem, size = 0x4000, scoped, tag = 'scratch operand']
  #allocation3 [shape = 'bf16[2,32,128]{2,1,0:T(8,128)(2,1)}', space=vmem, size = 0x4000, scoped, tag = 'scratch operand']
  %s0 = inlined_call_operand.hbm [shape: f32[2,16,128], index: 0, kind: input, shape index: {}]
  %s1 = inlined_call_operand.hbm [shape: bf16[7,128,128], index: 1, kind: input, shape index: {}]
  %s2 = inlined_call_operand.vmem [shape: f32[1,128], index: 2, kind: input, shape index: {}]
  %s3 = inlined_call_operand.vmem [shape: f32[1,128], index: 3, kind: input, shape index: {}]
  %s4 = inlined_call_operand.hbm [shape: bf16[7,128,128], index: 4, kind: input, shape index: {}]
  %s5 = inlined_call_operand.vmem [shape: f32[1,128], index: 5, kind: input, shape index: {}]
  %s6 = inlined_call_operand.vmem [shape: f32[1,128], index: 6, kind: input, shape index: {}]
  %s7 = inlined_call_operand.hbm [shape: f32[2,16,128], index: 7, kind: output, shape index: {}]
  %s8 = sld [smem:[#allocation0]]
  $region50: #{tpu_custom_call.1} parent=0
    _
  %s10 = ssub.s32 1, %s8
  %s11 = scalar_select 0, %s10, %s8
  $region1: #{tpu_custom_call.1} parent=0
    #allocation4 [shape = 'u8[16384]{0}', space=vmem, size = 0x4000, scoped, tag = 'input window, operand 0, single buffered']
    #allocation5 [shape = 's32[1]{0}', space=sflag, size = 0x4, scoped, tag = 'scoped memory for tpu_custom_call.1']
    #allocation6 [shape = 's32[1]{0}', space=sflag, size = 0x4, scoped, tag = 'scoped memory for tpu_custom_call.1']
    #allocation7 [shape = 'u8[229376]{0}', space=vmem, size = 0x38000, scoped, tag = 'input window, operand 1, single buffered']
    #allocation8 [shape = 's32[1]{0}', space=sflag, size = 0x4, scoped, tag = 'scoped memory for tpu_custom_call.1']
    #allocation9 [shape = 'u8[229376]{0}', space=vmem, size = 0x38000, scoped, tag = 'input window, operand 4, single buffered']
    #allocation10 [shape = 'u8[16384]{0}', space=vmem, size = 0x4000, scoped, tag = 'output window, operand 0, single buffered']
    %12 = vsyncpa [#allocation5], 0
    %13 = vsyncpa [#allocation8], 0
    %14 = vsyncpa [#allocation6], 0
    // Predicated region
    $region2: #{tpu_custom_call.1} parent=1 // pred_check
      _
    $region3: #{tpu_custom_call.1} parent=1 // pred_check_branch
      %16 = sbr.rel (0) target = $region5
    $region4: #{tpu_custom_call.1} parent=1 // pred_region
      %s18 = ssub.s32 512, 512
      %19 = vsyncadd [#allocation5], %s18
      %s20 = sshll.u32 [#allocation4], 4
      %s21 = int_to_ptr.vmem [resolvable:$true] %s20
      %26 = dma.hbm_to_vmem [thread:$0]  %s0, 512, %s21, [#allocation5], 128, 128, 8
    $region5: #{tpu_custom_call.1} parent=1 // pred_fallthru
      _
    // Predicated region
    $region6: #{tpu_custom_call.1} parent=1 // pred_check
      _
    $region7: #{tpu_custom_call.1} parent=1 // pred_check_branch
      %28 = sbr.rel (0) target = $region9
    $region8: #{tpu_custom_call.1} parent=1 // pred_region
      %s30 = ssub.s32 7168, 7168
      %31 = vsyncadd [#allocation8], %s30
      %s32 = sshll.u32 [#allocation7], 4
      %s33 = int_to_ptr.vmem [resolvable:$true] %s32
      %38 = dma.hbm_to_vmem [thread:$0]  %s1, 7168, %s33, [#allocation8], 64, 64, 4
    $region9: #{tpu_custom_call.1} parent=1 // pred_fallthru
      _
    // Predicated region
    $region10: #{tpu_custom_call.1} parent=1 // pred_check
      _
    $region11: #{tpu_custom_call.1} parent=1 // pred_check_branch
      %40 = sbr.rel (0) target = $region13
    $region12: #{tpu_custom_call.1} parent=1 // pred_region
      _
    $region13: #{tpu_custom_call.1} parent=1 // pred_fallthru
      _
    // Predicated region
    $region14: #{tpu_custom_call.1} parent=1 // pred_check
      _
    $region15: #{tpu_custom_call.1} parent=1 // pred_check_branch
      %42 = sbr.rel (0) target = $region17
    $region16: #{tpu_custom_call.1} parent=1 // pred_region
      _
    $region17: #{tpu_custom_call.1} parent=1 // pred_fallthru
      _
    // Predicated region
    $region18: #{tpu_custom_call.1} parent=1 // pred_check
      _
    $region19: #{tpu_custom_call.1} parent=1 // pred_check_branch
      %44 = sbr.rel (0) target = $region21
    $region20: #{tpu_custom_call.1} parent=1 // pred_region
      %s46 = ssub.s32 7168, 7168
      %47 = vsyncadd [#allocation8], %s46
      %s48 = sshll.u32 [#allocation9], 4
      %s49 = int_to_ptr.vmem [resolvable:$true] %s48
      %54 = dma.hbm_to_vmem [thread:$0]  %s4, 7168, %s49, [#allocation8], 64, 64, 4
    $region21: #{tpu_custom_call.1} parent=1 // pred_fallthru
      _
    // Predicated region
    $region22: #{tpu_custom_call.1} parent=1 // pred_check
      _
    $region23: #{tpu_custom_call.1} parent=1 // pred_check_branch
      %56 = sbr.rel (0) target = $region25
    $region24: #{tpu_custom_call.1} parent=1 // pred_region
      _
    $region25: #{tpu_custom_call.1} parent=1 // pred_fallthru
      _
    // Predicated region
    $region26: #{tpu_custom_call.1} parent=1 // pred_check
      _
    $region27: #{tpu_custom_call.1} parent=1 // pred_check_branch
      %58 = sbr.rel (0) target = $region29
    $region28: #{tpu_custom_call.1} parent=1 // pred_region
      _
    $region29: #{tpu_custom_call.1} parent=1 // pred_fallthru
      _
    // Predicated region
    $region30: #{tpu_custom_call.1} parent=1 // pred_check
      _
    $region31: #{tpu_custom_call.1} parent=1 // pred_check_branch
      %60 = sbr.rel (0) target = $region33
    $region32: #{tpu_custom_call.1} parent=1 // pred_region
      %61 = dma.done [#allocation5], 512
    $region33: #{tpu_custom_call.1} parent=1 // pred_fallthru
      _
    // Predicated region
    $region34: #{tpu_custom_call.1} parent=1 // pred_check
      _
    $region35: #{tpu_custom_call.1} parent=1 // pred_check_branch
      %63 = sbr.rel (0) target = $region37
    $region36: #{tpu_custom_call.1} parent=1 // pred_region
      %64 = dma.done [#allocation8], 7168
    $region37: #{tpu_custom_call.1} parent=1 // pred_fallthru
      _
    // Predicated region
    $region38: #{tpu_custom_call.1} parent=1 // pred_check
      _
    $region39: #{tpu_custom_call.1} parent=1 // pred_check_branch
      %66 = sbr.rel (0) target = $region41
    $region40: #{tpu_custom_call.1} parent=1 // pred_region
      %67 = dma.done [#allocation8], 7168
    $region41: #{tpu_custom_call.1} parent=1 // pred_fallthru
      _
    %69 = vst [vmem:[#allocation2] sm:$0xf] 0
    %70 = vst [vmem:[#allocation2 + $0x10] sm:$0xf] 0
    %71 = vst [vmem:[#allocation2 + $0xc] sm:$0xf] 0
    %72 = vst [vmem:[#allocation2 + $0x1c] sm:$0xf] 0
    %73 = vst [vmem:[#allocation3] sm:$0xf] 0
    %74 = vst [vmem:[#allocation3 + $0x10] sm:$0xf] 0
    %75 = vst [vmem:[#allocation3 + $0xc] sm:$0xf] 0
    %76 = vst [vmem:[#allocation3 + $0x1c] sm:$0xf] 0
    %v77 = vld [vmem:[#allocation4] sm:$0xff]
    %v78 = vld [vmem:[#allocation4 + $0x8] sm:$0xff]
    %v79 = vld [vmem:[#allocation4 + $0x10] sm:$0xff]
    %v80 = vld [vmem:[#allocation4 + $0x18] sm:$0xff]
    %v81 = vpack.c.bf16 %v78, %v77
    %v82 = vpack.c.bf16 %v80, %v79
    %v85 = vunpack.c.l.b16 %v81
    %v86 = vunpack.c.h.b16 %v81
    %v87 = vunpack.c.l.b16 %v82
    %v88 = vunpack.c.h.b16 %v82
    %v89 = vpack.c.b16 %v85, %v85
    %v90 = vpack.c.b16 %v86, %v86
    %v91 = vpack.c.b16 %v87, %v87
    %v92 = vpack.c.b16 %v88, %v88
    %97 = vst [vmem:[#allocation2 + $0x4] sm:$0xf] %v89
    %98 = vst [vmem:[#allocation2 + $0x8] sm:$0xf] %v90
    %99 = vst [vmem:[#allocation2 + $0x14] sm:$0xf] %v91
    %100 = vst [vmem:[#allocation2 + $0x18] sm:$0xf] %v92
    %v101 = vld [vmem:[#allocation2] sm:$0xc]
    %v102 = vld [vmem:[#allocation2 + $0x4] sm:$0xf]
    %v103 = vld [vmem:[#allocation2 + $0x8] sm:$0x7]
    %v104 = vld [vmem:[#allocation2 + $0x10] sm:$0xc]
    %v105 = vld [vmem:[#allocation2 + $0x14] sm:$0xf]
    %v106 = vld [vmem:[#allocation2 + $0x18] sm:$0x7]
    %vm107 = vsmask.f32 1280
    %vm108 = vsmask.f32 5392
    %vm109 = vmor %vm107, %vm108
    %v111 = vshrl.u32 %v101, 16
    %v113 = vrot.slane %v111, 6
    %v114 = vshll.u32 %v101, 16
    %v116 = vrot.slane %v114, 7
    %v117 = vor.u32 %v113, %v116
    %v118 = vrot.slane %v117, 4
    %v120 = vshrl.u32 %v102, 16
    %v122 = vrot.slane %v120, 6
    %v123 = vshll.u32 %v102, 16
    %v125 = vrot.slane %v123, 7
    %v126 = vor.u32 %v122, %v125
    %v127 = vsel %vm109, %v118, %v126
    %v128 = vrot.slane %v126, 4
    %v130 = vshrl.u32 %v103, 16
    %v132 = vrot.slane %v130, 6
    %v133 = vshll.u32 %v103, 16
    %v135 = vrot.slane %v133, 7
    %v136 = vor.u32 %v132, %v135
    %v137 = vsel %vm109, %v128, %v136
    %v139 = vshrl.u32 %v104, 16
    %v141 = vrot.slane %v139, 6
    %v142 = vshll.u32 %v104, 16
    %v144 = vrot.slane %v142, 7
    %v145 = vor.u32 %v141, %v144
    %v146 = vrot.slane %v145, 4
    %v148 = vshrl.u32 %v105, 16
    %v150 = vrot.slane %v148, 6
    %v151 = vshll.u32 %v105, 16
    %v153 = vrot.slane %v151, 7
    %v154 = vor.u32 %v150, %v153
    %v155 = vsel %vm109, %v146, %v154
    %v156 = vrot.slane %v154, 4
    %v158 = vshrl.u32 %v106, 16
    %v160 = vrot.slane %v158, 6
    %v161 = vshll.u32 %v106, 16
    %v163 = vrot.slane %v161, 7
    %v164 = vor.u32 %v160, %v163
    %v165 = vsel %vm109, %v156, %v164
    %v166 = vld [vmem:[#allocation7] sm:$0xf]
    %v167 = vld [vmem:[#allocation7 + $0x4] sm:$0xf]
    %v168 = vld [vmem:[#allocation7 + $0x8] sm:$0xf]
    %v169 = vld [vmem:[#allocation7 + $0xc] sm:$0xf]
    %v170 = vld [vmem:[#allocation7 + $0x10] sm:$0xf]
    %v171 = vld [vmem:[#allocation7 + $0x14] sm:$0xf]
    %v172 = vld [vmem:[#allocation7 + $0x18] sm:$0xf]
    %v173 = vld [vmem:[#allocation7 + $0x1c] sm:$0xf]
    %v174 = vld [vmem:[#allocation7 + $0x20] sm:$0xf]
    %v175 = vld [vmem:[#allocation7 + $0x24] sm:$0xf]
    %v176 = vld [vmem:[#allocation7 + $0x28] sm:$0xf]
    %v177 = vld [vmem:[#allocation7 + $0x2c] sm:$0xf]
    %v178 = vld [vmem:[#allocation7 + $0x30] sm:$0xf]
    %v179 = vld [vmem:[#allocation7 + $0x34] sm:$0xf]
    %v180 = vld [vmem:[#allocation7 + $0x38] sm:$0xf]
    %v181 = vld [vmem:[#allocation7 + $0x3c] sm:$0xf]
    %v182 = vld [vmem:[#allocation2] sm:$0x8]
    %v183 = vld [vmem:[#allocation2 + $0x10] sm:$0x8]
    %vm190 = vcmask 1040384
    %vm191 = vcmask 1044484
    %vm192 = vmor %vm190, %vm191
    %v193 = vrot.slane %v182, 7
    %v194 = vrot.slane %v193, 4
    %v195 = vrot.slane %v102, 7
    %v196 = vsel %vm192, %v194, %v195
    %v197 = vrot.slane %v195, 4
    %v198 = vrot.slane %v103, 7
    %v199 = vsel %vm192, %v197, %v198
    %v200 = vrot.slane %v183, 7
    %v201 = vrot.slane %v200, 4
    %v202 = vrot.slane %v105, 7
    %v203 = vsel %vm192, %v201, %v202
    %v204 = vrot.slane %v202, 4
    %v205 = vrot.slane %v106, 7
    %v206 = vsel %vm192, %v204, %v205
    %s207 = scalar_lea.vmem [#allocation7], 64
    %v208 = vld [vmem:[%s207] sm:$0xf]
    %v209 = vld [vmem:[%s207 + $0x4] sm:$0xf]
    %v210 = vld [vmem:[%s207 + $0x8] sm:$0xf]
    %v211 = vld [vmem:[%s207 + $0xc] sm:$0xf]
    %v212 = vld [vmem:[%s207 + $0x10] sm:$0xf]
    %v213 = vld [vmem:[%s207 + $0x14] sm:$0xf]
    %v214 = vld [vmem:[%s207 + $0x18] sm:$0xf]
    %v215 = vld [vmem:[%s207 + $0x1c] sm:$0xf]
    %v216 = vld [vmem:[%s207 + $0x20] sm:$0xf]
    %v217 = vld [vmem:[%s207 + $0x24] sm:$0xf]
    %v218 = vld [vmem:[%s207 + $0x28] sm:$0xf]
    %v219 = vld [vmem:[%s207 + $0x2c] sm:$0xf]
    %v220 = vld [vmem:[%s207 + $0x30] sm:$0xf]
    %v221 = vld [vmem:[%s207 + $0x34] sm:$0xf]
    %v222 = vld [vmem:[%s207 + $0x38] sm:$0xf]
    %v223 = vld [vmem:[%s207 + $0x3c] sm:$0xf]
    %v224 = vunpack.c.l.b16 %v196
    %v225 = vunpack.c.l.b16 %v199
    %v226 = vunpack.c.l.b16 %v203
    %v227 = vunpack.c.l.b16 %v206
    %v228 = vpack.c.b16 %v225, %v224
    %v229 = vpack.c.b16 %v227, %v226
    %v248 = vunpack.c.l.b16 %v208
    %v249 = vunpack.c.l.b16 %v209
    %v250 = vunpack.c.l.b16 %v210
    %v251 = vunpack.c.l.b16 %v211
    %v252 = vunpack.c.l.b16 %v212
    %v253 = vunpack.c.l.b16 %v213
    %v254 = vunpack.c.l.b16 %v214
    %v255 = vunpack.c.l.b16 %v215
    %v256 = vunpack.c.l.b16 %v216
    %v257 = vunpack.c.l.b16 %v217
    %v258 = vunpack.c.l.b16 %v218
    %v259 = vunpack.c.l.b16 %v219
    %v260 = vunpack.c.l.b16 %v220
    %v261 = vunpack.c.l.b16 %v221
    %v262 = vunpack.c.l.b16 %v222
    %v263 = vunpack.c.l.b16 %v223
    %v264 = vpack.c.b16 %v249, %v248
    %v265 = vpack.c.b16 %v251, %v250
    %v266 = vpack.c.b16 %v253, %v252
    %v267 = vpack.c.b16 %v255, %v254
    %v268 = vpack.c.b16 %v257, %v256
    %v269 = vpack.c.b16 %v259, %v258
    %v270 = vpack.c.b16 %v261, %v260
    %v271 = vpack.c.b16 %v263, %v262
    %280 = vmatprep.subr.bf16.mxu0 0
    %281 = vmatpush1.bf16.msra.mxu0 %v271
    %282 = vmatprep.subr.bf16.mxu0 0
    %283 = vmatpush1.bf16.msra.mxu0 %v270
    %284 = vmatprep.subr.bf16.mxu0 0
    %285 = vmatpush1.bf16.msra.mxu0 %v269
    %286 = vmatprep.subr.bf16.mxu0 0
    %287 = vmatpush1.bf16.msra.mxu0 %v268
    %288 = vmatprep.subr.bf16.mxu0 0
    %289 = vmatpush1.bf16.msra.mxu0 %v267
    %290 = vmatprep.subr.bf16.mxu0 0
    %291 = vmatpush1.bf16.msra.mxu0 %v266
    %292 = vmatprep.subr.bf16.mxu0 0
    %293 = vmatpush1.bf16.msra.mxu0 %v265
    %294 = vmatprep.subr.bf16.mxu0 0
    %295 = vmatpush1.bf16.msra.mxu0 %v264
    %296 = vmatprep.subr.bf16.mxu0 0
    %297 = vmatpush2.bf16.msra.mxu0 0
    %298 = vmatprep.subr.bf16.mxu0 0
    %299 = vmatpush2.bf16.msra.mxu0 0
    %300 = vmatprep.subr.bf16.mxu0 0
    %301 = vmatpush2.bf16.msra.mxu0 0
    %302 = vmatprep.subr.bf16.mxu0 0
    %303 = vmatpush2.bf16.msra.mxu0 0
    %304 = vmatprep.subr.bf16.mxu0 0
    %305 = vmatpush2.bf16.msra.mxu0 0
    %306 = vmatprep.subr.bf16.mxu0 0
    %307 = vmatpush2.bf16.msra.mxu0 0
    %308 = vmatprep.subr.bf16.mxu0 0
    %309 = vmatpush2.bf16.msra.mxu0 0
    %310 = vmatprep.subr.bf16.mxu0 0
    %311 = vmatpush2.bf16.msra.mxu0 0
    %312 = vmatprep.mubr.bf16.mxu0 0
    %313 = vmatmul.mubr.bf16.gmra.mxu0 %v228
    %v314 = vpop.f32.mrf.mxu0
    %v315 = vadd.f32 0.0, %v314
    %v316 = vpop.f32.mrf.mxu0
    %v317 = vpop.f32.mrf.mxu0
    %v318 = vadd.f32 0.0, %v317
    %v319 = vpop.f32.mrf.mxu0
    %320 = vmatprep.mubr.bf16.mxu0 0
    %321 = vmatmul.mubr.bf16.gmra.mxu0 %v229
    %v322 = vpop.f32.mrf.mxu0
    %v323 = vadd.f32 0.0, %v322
    %v324 = vpop.f32.mrf.mxu0
    %v325 = vpop.f32.mrf.mxu0
    %v326 = vadd.f32 0.0, %v325
    %v327 = vpop.f32.mrf.mxu0
    %328 = vdwg.mxu0
    %v329 = vunpack.c.l.b16 %v127
    %v330 = vunpack.c.l.b16 %v137
    %v331 = vunpack.c.l.b16 %v155
    %v332 = vunpack.c.l.b16 %v165
    %v333 = vpack.c.b16 %v330, %v329
    %v334 = vpack.c.b16 %v332, %v331
    %v353 = vunpack.c.l.b16 %v166
    %v354 = vunpack.c.l.b16 %v167
    %v355 = vunpack.c.l.b16 %v168
    %v356 = vunpack.c.l.b16 %v169
    %v357 = vunpack.c.l.b16 %v170
    %v358 = vunpack.c.l.b16 %v171
    %v359 = vunpack.c.l.b16 %v172
    %v360 = vunpack.c.l.b16 %v173
    %v361 = vunpack.c.l.b16 %v174
    %v362 = vunpack.c.l.b16 %v175
    %v363 = vunpack.c.l.b16 %v176
    %v364 = vunpack.c.l.b16 %v177
    %v365 = vunpack.c.l.b16 %v178
    %v366 = vunpack.c.l.b16 %v179
    %v367 = vunpack.c.l.b16 %v180
    %v368 = vunpack.c.l.b16 %v181
    %v369 = vpack.c.b16 %v354, %v353
    %v370 = vpack.c.b16 %v356, %v355
    %v371 = vpack.c.b16 %v358, %v357
    %v372 = vpack.c.b16 %v360, %v359
    %v373 = vpack.c.b16 %v362, %v361
    %v374 = vpack.c.b16 %v364, %v363
    %v375 = vpack.c.b16 %v366, %v365
    %v376 = vpack.c.b16 %v368, %v367
    %385 = vmatprep.subr.bf16.mxu0 0
    %386 = vmatpush1.bf16.msra.mxu0 %v376
    %387 = vmatprep.subr.bf16.mxu0 0
    %388 = vmatpush1.bf16.msra.mxu0 %v375
    %389 = vmatprep.subr.bf16.mxu0 0
    %390 = vmatpush1.bf16.msra.mxu0 %v374
    %391 = vmatprep.subr.bf16.mxu0 0
    %392 = vmatpush1.bf16.msra.mxu0 %v373
    %393 = vmatprep.subr.bf16.mxu0 0
    %394 = vmatpush1.bf16.msra.mxu0 %v372
    %395 = vmatprep.subr.bf16.mxu0 0
    %396 = vmatpush1.bf16.msra.mxu0 %v371
    %397 = vmatprep.subr.bf16.mxu0 0
    %398 = vmatpush1.bf16.msra.mxu0 %v370
    %399 = vmatprep.subr.bf16.mxu0 0
    %400 = vmatpush1.bf16.msra.mxu0 %v369
    %401 = vmatprep.subr.bf16.mxu0 0
    %402 = vmatpush2.bf16.msra.mxu0 0
    %403 = vmatprep.subr.bf16.mxu0 0
    %404 = vmatpush2.bf16.msra.mxu0 0
    %405 = vmatprep.subr.bf16.mxu0 0
    %406 = vmatpush2.bf16.msra.mxu0 0
    %407 = vmatprep.subr.bf16.mxu0 0
    %408 = vmatpush2.bf16.msra.mxu0 0
    %409 = vmatprep.subr.bf16.mxu0 0
    %410 = vmatpush2.bf16.msra.mxu0 0
    %411 = vmatprep.subr.bf16.mxu0 0
    %412 = vmatpush2.bf16.msra.mxu0 0
    %413 = vmatprep.subr.bf16.mxu0 0
    %414 = vmatpush2.bf16.msra.mxu0 0
    %415 = vmatprep.subr.bf16.mxu0 0
    %416 = vmatpush2.bf16.msra.mxu0 0
    %417 = vmatprep.mubr.bf16.mxu0 0
    %418 = vmatmul.mubr.bf16.gmra.mxu0 %v333
    %v419 = vpop.f32.mrf.mxu0
    %v420 = vadd.f32 %v315, %v419
    %v421 = vpop.f32.mrf.mxu0
    %v422 = vpop.f32.mrf.mxu0
    %v423 = vadd.f32 %v318, %v422
    %v424 = vpop.f32.mrf.mxu0
    %425 = vmatprep.mubr.bf16.mxu0 0
    %426 = vmatmul.mubr.bf16.gmra.mxu0 %v334
    %v427 = vpop.f32.mrf.mxu0
    %v428 = vadd.f32 %v323, %v427
    %v429 = vpop.f32.mrf.mxu0
    %v430 = vpop.f32.mrf.mxu0
    %v431 = vadd.f32 %v326, %v430
    %v432 = vpop.f32.mrf.mxu0
    %433 = vdwg.mxu0
    %v434 = vld [vmem:[#allocation2 + $0x8] sm:$0xf]
    %v435 = vld [vmem:[#allocation2 + $0x18] sm:$0xf]
    %vm436 = vsmask.f32 256
    %vm437 = vsmask.f32 4368
    %vm438 = vmor %vm436, %vm437
    %v440 = vshrl.u32 %v182, 16
    %v442 = vrot.slane %v440, 7
    %v443 = vrot.slane %v442, 4
    %v444 = vrot.slane %v120, 7
    %v445 = vor.u32 %v444, %v123
    %v446 = vsel %vm438, %v443, %v445
    %v447 = vrot.slane %v444, 4
    %v449 = vshrl.u32 %v434, 16
    %v451 = vrot.slane %v449, 7
    %v452 = vshll.u32 %v434, 16
    %v454 = vor.u32 %v451, %v452
    %v455 = vsel %vm438, %v447, %v454
    %v457 = vshrl.u32 %v183, 16
    %v459 = vrot.slane %v457, 7
    %v460 = vrot.slane %v459, 4
    %v461 = vrot.slane %v148, 7
    %v462 = vor.u32 %v461, %v151
    %v463 = vsel %vm438, %v460, %v462
    %v464 = vrot.slane %v461, 4
    %v466 = vshrl.u32 %v435, 16
    %v468 = vrot.slane %v466, 7
    %v469 = vshll.u32 %v435, 16
    %v471 = vor.u32 %v468, %v469
    %v472 = vsel %vm438, %v464, %v471
    %s473 = scalar_lea.vmem [#allocation7], 128
    %v474 = vld [vmem:[%s473] sm:$0xf]
    %v475 = vld [vmem:[%s473 + $0x4] sm:$0xf]
    %v476 = vld [vmem:[%s473 + $0x8] sm:$0xf]
    %v477 = vld [vmem:[%s473 + $0xc] sm:$0xf]
    %v478 = vld [vmem:[%s473 + $0x10] sm:$0xf]
    %v479 = vld [vmem:[%s473 + $0x14] sm:$0xf]
    %v480 = vld [vmem:[%s473 + $0x18] sm:$0xf]
    %v481 = vld [vmem:[%s473 + $0x1c] sm:$0xf]
    %v482 = vld [vmem:[%s473 + $0x20] sm:$0xf]
    %v483 = vld [vmem:[%s473 + $0x24] sm:$0xf]
    %v484 = vld [vmem:[%s473 + $0x28] sm:$0xf]
    %v485 = vld [vmem:[%s473 + $0x2c] sm:$0xf]
    %v486 = vld [vmem:[%s473 + $0x30] sm:$0xf]
    %v487 = vld [vmem:[%s473 + $0x34] sm:$0xf]
    %v488 = vld [vmem:[%s473 + $0x38] sm:$0xf]
    %v489 = vld [vmem:[%s473 + $0x3c] sm:$0xf]
    %v490 = vunpack.c.l.b16 %v446
    %v491 = vunpack.c.l.b16 %v455
    %v492 = vunpack.c.l.b16 %v463
    %v493 = vunpack.c.l.b16 %v472
    %v494 = vpack.c.b16 %v491, %v490
    %v495 = vpack.c.b16 %v493, %v492
    %v514 = vunpack.c.l.b16 %v474
    %v515 = vunpack.c.l.b16 %v475
    %v516 = vunpack.c.l.b16 %v476
    %v517 = vunpack.c.l.b16 %v477
    %v518 = vunpack.c.l.b16 %v478
    %v519 = vunpack.c.l.b16 %v479
    %v520 = vunpack.c.l.b16 %v480
    %v521 = vunpack.c.l.b16 %v481
    %v522 = vunpack.c.l.b16 %v482
    %v523 = vunpack.c.l.b16 %v483
    %v524 = vunpack.c.l.b16 %v484
    %v525 = vunpack.c.l.b16 %v485
    %v526 = vunpack.c.l.b16 %v486
    %v527 = vunpack.c.l.b16 %v487
    %v528 = vunpack.c.l.b16 %v488
    %v529 = vunpack.c.l.b16 %v489
    %v530 = vpack.c.b16 %v515, %v514
    %v531 = vpack.c.b16 %v517, %v516
    %v532 = vpack.c.b16 %v519, %v518
    %v533 = vpack.c.b16 %v521, %v520
    %v534 = vpack.c.b16 %v523, %v522
    %v535 = vpack.c.b16 %v525, %v524
    %v536 = vpack.c.b16 %v527, %v526
    %v537 = vpack.c.b16 %v529, %v528
    %546 = vmatprep.subr.bf16.mxu0 0
    %547 = vmatpush1.bf16.msra.mxu0 %v537
    %548 = vmatprep.subr.bf16.mxu0 0
    %549 = vmatpush1.bf16.msra.mxu0 %v536
    %550 = vmatprep.subr.bf16.mxu0 0
    %551 = vmatpush1.bf16.msra.mxu0 %v535
    %552 = vmatprep.subr.bf16.mxu0 0
    %553 = vmatpush1.bf16.msra.mxu0 %v534
    %554 = vmatprep.subr.bf16.mxu0 0
    %555 = vmatpush1.bf16.msra.mxu0 %v533
    %556 = vmatprep.subr.bf16.mxu0 0
    %557 = vmatpush1.bf16.msra.mxu0 %v532
    %558 = vmatprep.subr.bf16.mxu0 0
    %559 = vmatpush1.bf16.msra.mxu0 %v531
    %560 = vmatprep.subr.bf16.mxu0 0
    %561 = vmatpush1.bf16.msra.mxu0 %v530
    %562 = vmatprep.subr.bf16.mxu0 0
    %563 = vmatpush2.bf16.msra.mxu0 0
    %564 = vmatprep.subr.bf16.mxu0 0
    %565 = vmatpush2.bf16.msra.mxu0 0
    %566 = vmatprep.subr.bf16.mxu0 0
    %567 = vmatpush2.bf16.msra.mxu0 0
    %568 = vmatprep.subr.bf16.mxu0 0
    %569 = vmatpush2.bf16.msra.mxu0 0
    %570 = vmatprep.subr.bf16.mxu0 0
    %571 = vmatpush2.bf16.msra.mxu0 0
    %572 = vmatprep.subr.bf16.mxu0 0
    %573 = vmatpush2.bf16.msra.mxu0 0
    %574 = vmatprep.subr.bf16.mxu0 0
    %575 = vmatpush2.bf16.msra.mxu0 0
    %576 = vmatprep.subr.bf16.mxu0 0
    %577 = vmatpush2.bf16.msra.mxu0 0
    %578 = vmatprep.mubr.bf16.mxu0 0
    %579 = vmatmul.mubr.bf16.gmra.mxu0 %v494
    %v580 = vpop.f32.mrf.mxu0
    %v581 = vadd.f32 0.0, %v580
    %v582 = vpop.f32.mrf.mxu0
    %v583 = vpop.f32.mrf.mxu0
    %v584 = vadd.f32 0.0, %v583
    %v585 = vpop.f32.mrf.mxu0
    %586 = vmatprep.mubr.bf16.mxu0 0
    %587 = vmatmul.mubr.bf16.gmra.mxu0 %v495
    %v588 = vpop.f32.mrf.mxu0
    %v589 = vadd.f32 0.0, %v588
    %v590 = vpop.f32.mrf.mxu0
    %v591 = vpop.f32.mrf.mxu0
    %v592 = vadd.f32 0.0, %v591
    %v593 = vpop.f32.mrf.mxu0
    %594 = vdwg.mxu0
    %v595 = vadd.f32 %v420, %v581
    %v596 = vadd.f32 %v423, %v584
    %v597 = vadd.f32 %v428, %v589
    %v598 = vadd.f32 %v431, %v592
    %s599 = scalar_lea.vmem [#allocation7], 192
    %v600 = vld [vmem:[%s599] sm:$0xf]
    %v601 = vld [vmem:[%s599 + $0x4] sm:$0xf]
    %v602 = vld [vmem:[%s599 + $0x8] sm:$0xf]
    %v603 = vld [vmem:[%s599 + $0xc] sm:$0xf]
    %v604 = vld [vmem:[%s599 + $0x10] sm:$0xf]
    %v605 = vld [vmem:[%s599 + $0x14] sm:$0xf]
    %v606 = vld [vmem:[%s599 + $0x18] sm:$0xf]
    %v607 = vld [vmem:[%s599 + $0x1c] sm:$0xf]
    %v608 = vld [vmem:[%s599 + $0x20] sm:$0xf]
    %v609 = vld [vmem:[%s599 + $0x24] sm:$0xf]
    %v610 = vld [vmem:[%s599 + $0x28] sm:$0xf]
    %v611 = vld [vmem:[%s599 + $0x2c] sm:$0xf]
    %v612 = vld [vmem:[%s599 + $0x30] sm:$0xf]
    %v613 = vld [vmem:[%s599 + $0x34] sm:$0xf]
    %v614 = vld [vmem:[%s599 + $0x38] sm:$0xf]
    %v615 = vld [vmem:[%s599 + $0x3c] sm:$0xf]
    %v618 = vunpack.c.l.b16 %v102
    %v619 = vunpack.c.l.b16 %v434
    %v620 = vunpack.c.l.b16 %v105
    %v621 = vunpack.c.l.b16 %v435
    %v622 = vpack.c.b16 %v619, %v618
    %v623 = vpack.c.b16 %v621, %v620
    %v642 = vunpack.c.l.b16 %v600
    %v643 = vunpack.c.l.b16 %v601
    %v644 = vunpack.c.l.b16 %v602
    %v645 = vunpack.c.l.b16 %v603
    %v646 = vunpack.c.l.b16 %v604
    %v647 = vunpack.c.l.b16 %v605
    %v648 = vunpack.c.l.b16 %v606
    %v649 = vunpack.c.l.b16 %v607
    %v650 = vunpack.c.l.b16 %v608
    %v651 = vunpack.c.l.b16 %v609
    %v652 = vunpack.c.l.b16 %v610
    %v653 = vunpack.c.l.b16 %v611
    %v654 = vunpack.c.l.b16 %v612
    %v655 = vunpack.c.l.b16 %v613
    %v656 = vunpack.c.l.b16 %v614
    %v657 = vunpack.c.l.b16 %v615
    %v658 = vpack.c.b16 %v643, %v642
    %v659 = vpack.c.b16 %v645, %v644
    %v660 = vpack.c.b16 %v647, %v646
    %v661 = vpack.c.b16 %v649, %v648
    %v662 = vpack.c.b16 %v651, %v650
    %v663 = vpack.c.b16 %v653, %v652
    %v664 = vpack.c.b16 %v655, %v654
    %v665 = vpack.c.b16 %v657, %v656
    %674 = vmatprep.subr.bf16.mxu0 0
    %675 = vmatpush1.bf16.msra.mxu0 %v665
    %676 = vmatprep.subr.bf16.mxu0 0
    %677 = vmatpush1.bf16.msra.mxu0 %v664
    %678 = vmatprep.subr.bf16.mxu0 0
    %679 = vmatpush1.bf16.msra.mxu0 %v663
    %680 = vmatprep.subr.bf16.mxu0 0
    %681 = vmatpush1.bf16.msra.mxu0 %v662
    %682 = vmatprep.subr.bf16.mxu0 0
    %683 = vmatpush1.bf16.msra.mxu0 %v661
    %684 = vmatprep.subr.bf16.mxu0 0
    %685 = vmatpush1.bf16.msra.mxu0 %v660
    %686 = vmatprep.subr.bf16.mxu0 0
    %687 = vmatpush1.bf16.msra.mxu0 %v659
    %688 = vmatprep.subr.bf16.mxu0 0
    %689 = vmatpush1.bf16.msra.mxu0 %v658
    %690 = vmatprep.subr.bf16.mxu0 0
    %691 = vmatpush2.bf16.msra.mxu0 0
    %692 = vmatprep.subr.bf16.mxu0 0
    %693 = vmatpush2.bf16.msra.mxu0 0
    %694 = vmatprep.subr.bf16.mxu0 0
    %695 = vmatpush2.bf16.msra.mxu0 0
    %696 = vmatprep.subr.bf16.mxu0 0
    %697 = vmatpush2.bf16.msra.mxu0 0
    %698 = vmatprep.subr.bf16.mxu0 0
    %699 = vmatpush2.bf16.msra.mxu0 0
    %700 = vmatprep.subr.bf16.mxu0 0
    %701 = vmatpush2.bf16.msra.mxu0 0
    %702 = vmatprep.subr.bf16.mxu0 0
    %703 = vmatpush2.bf16.msra.mxu0 0
    %704 = vmatprep.subr.bf16.mxu0 0
    %705 = vmatpush2.bf16.msra.mxu0 0
    %706 = vmatprep.mubr.bf16.mxu0 0
    %707 = vmatmul.mubr.bf16.gmra.mxu0 %v622
    %v708 = vpop.f32.mrf.mxu0
    %v709 = vadd.f32 0.0, %v708
    %v710 = vpop.f32.mrf.mxu0
    %v711 = vpop.f32.mrf.mxu0
    %v712 = vadd.f32 0.0, %v711
    %v713 = vpop.f32.mrf.mxu0
    %714 = vmatprep.mubr.bf16.mxu0 0
    %715 = vmatmul.mubr.bf16.gmra.mxu0 %v623
    %v716 = vpop.f32.mrf.mxu0
    %v717 = vadd.f32 0.0, %v716
    %v718 = vpop.f32.mrf.mxu0
    %v719 = vpop.f32.mrf.mxu0
    %v720 = vadd.f32 0.0, %v719
    %v721 = vpop.f32.mrf.mxu0
    %722 = vdwg.mxu0
    %v723 = vadd.f32 %v595, %v709
    %v724 = vadd.f32 %v596, %v712
    %v725 = vadd.f32 %v597, %v717
    %v726 = vadd.f32 %v598, %v720
    %v727 = vld [vmem:[#allocation2 + $0x4] sm:$0xf]
    %v728 = vld [vmem:[#allocation2 + $0x8] sm:$0xf]
    %v729 = vld [vmem:[#allocation2 + $0xc] sm:$0x1]
    %v730 = vld [vmem:[#allocation2 + $0x14] sm:$0xf]
    %v731 = vld [vmem:[#allocation2 + $0x18] sm:$0xf]
    %v732 = vld [vmem:[#allocation2 + $0x1c] sm:$0x1]
    %vm733 = vsmask.f32 3328
    %vm734 = vsmask.f32 7440
    %vm735 = vmor %vm733, %vm734
    %v737 = vshrl.u32 %v727, 16
    %v739 = vrot.slane %v737, 4
    %v740 = vshll.u32 %v727, 16
    %v742 = vrot.slane %v740, 5
    %v743 = vor.u32 %v739, %v742
    %v744 = vrot.slane %v743, 4
    %v746 = vshll.u32 %v728, 16
    %v748 = vrot.slane %v746, 5
    %v749 = vsel %vm735, %v744, %v748
    %v750 = vshrl.u32 %v728, 16
    %v752 = vrot.slane %v750, 4
    %v753 = vor.u32 %v752, %v748
    %v754 = vrot.slane %v753, 4
    %v756 = vshll.u32 %v729, 16
    %v758 = vrot.slane %v756, 5
    %v759 = vsel %vm735, %v754, %v758
    %v761 = vshrl.u32 %v730, 16
    %v763 = vrot.slane %v761, 4
    %v764 = vshll.u32 %v730, 16
    %v766 = vrot.slane %v764, 5
    %v767 = vor.u32 %v763, %v766
    %v768 = vrot.slane %v767, 4
    %v770 = vshll.u32 %v731, 16
    %v772 = vrot.slane %v770, 5
    %v773 = vsel %vm735, %v768, %v772
    %v774 = vshrl.u32 %v731, 16
    %v776 = vrot.slane %v774, 4
    %v777 = vor.u32 %v776, %v772
    %v778 = vrot.slane %v777, 4
    %v780 = vshll.u32 %v732, 16
    %v782 = vrot.slane %v780, 5
    %v783 = vsel %vm735, %v778, %v782
    %s784 = scalar_lea.vmem [#allocation7], 256
    %v785 = vld [vmem:[%s784] sm:$0xf]
    %v786 = vld [vmem:[%s784 + $0x4] sm:$0xf]
    %v787 = vld [vmem:[%s784 + $0x8] sm:$0xf]
    %v788 = vld [vmem:[%s784 + $0xc] sm:$0xf]
    %v789 = vld [vmem:[%s784 + $0x10] sm:$0xf]
    %v790 = vld [vmem:[%s784 + $0x14] sm:$0xf]
    %v791 = vld [vmem:[%s784 + $0x18] sm:$0xf]
    %v792 = vld [vmem:[%s784 + $0x1c] sm:$0xf]
    %v793 = vld [vmem:[%s784 + $0x20] sm:$0xf]
    %v794 = vld [vmem:[%s784 + $0x24] sm:$0xf]
    %v795 = vld [vmem:[%s784 + $0x28] sm:$0xf]
    %v796 = vld [vmem:[%s784 + $0x2c] sm:$0xf]
    %v797 = vld [vmem:[%s784 + $0x30] sm:$0xf]
    %v798 = vld [vmem:[%s784 + $0x34] sm:$0xf]
    %v799 = vld [vmem:[%s784 + $0x38] sm:$0xf]
    %v800 = vld [vmem:[%s784 + $0x3c] sm:$0xf]
    %v801 = vunpack.c.l.b16 %v749
    %v802 = vunpack.c.l.b16 %v759
    %v803 = vunpack.c.l.b16 %v773
    %v804 = vunpack.c.l.b16 %v783
    %v805 = vpack.c.b16 %v802, %v801
    %v806 = vpack.c.b16 %v804, %v803
    %v825 = vunpack.c.l.b16 %v785
    %v826 = vunpack.c.l.b16 %v786
    %v827 = vunpack.c.l.b16 %v787
    %v828 = vunpack.c.l.b16 %v788
    %v829 = vunpack.c.l.b16 %v789
    %v830 = vunpack.c.l.b16 %v790
    %v831 = vunpack.c.l.b16 %v791
    %v832 = vunpack.c.l.b16 %v792
    %v833 = vunpack.c.l.b16 %v793
    %v834 = vunpack.c.l.b16 %v794
    %v835 = vunpack.c.l.b16 %v795
    %v836 = vunpack.c.l.b16 %v796
    %v837 = vunpack.c.l.b16 %v797
    %v838 = vunpack.c.l.b16 %v798
    %v839 = vunpack.c.l.b16 %v799
    %v840 = vunpack.c.l.b16 %v800
    %v841 = vpack.c.b16 %v826, %v825
    %v842 = vpack.c.b16 %v828, %v827
    %v843 = vpack.c.b16 %v830, %v829
    %v844 = vpack.c.b16 %v832, %v831
    %v845 = vpack.c.b16 %v834, %v833
    %v846 = vpack.c.b16 %v836, %v835
    %v847 = vpack.c.b16 %v838, %v837
    %v848 = vpack.c.b16 %v840, %v839
    %857 = vmatprep.subr.bf16.mxu0 0
    %858 = vmatpush1.bf16.msra.mxu0 %v848
    %859 = vmatprep.subr.bf16.mxu0 0
    %860 = vmatpush1.bf16.msra.mxu0 %v847
    %861 = vmatprep.subr.bf16.mxu0 0
    %862 = vmatpush1.bf16.msra.mxu0 %v846
    %863 = vmatprep.subr.bf16.mxu0 0
    %864 = vmatpush1.bf16.msra.mxu0 %v845
    %865 = vmatprep.subr.bf16.mxu0 0
    %866 = vmatpush1.bf16.msra.mxu0 %v844
    %867 = vmatprep.subr.bf16.mxu0 0
    %868 = vmatpush1.bf16.msra.mxu0 %v843
    %869 = vmatprep.subr.bf16.mxu0 0
    %870 = vmatpush1.bf16.msra.mxu0 %v842
    %871 = vmatprep.subr.bf16.mxu0 0
    %872 = vmatpush1.bf16.msra.mxu0 %v841
    %873 = vmatprep.subr.bf16.mxu0 0
    %874 = vmatpush2.bf16.msra.mxu0 0
    %875 = vmatprep.subr.bf16.mxu0 0
    %876 = vmatpush2.bf16.msra.mxu0 0
    %877 = vmatprep.subr.bf16.mxu0 0
    %878 = vmatpush2.bf16.msra.mxu0 0
    %879 = vmatprep.subr.bf16.mxu0 0
    %880 = vmatpush2.bf16.msra.mxu0 0
    %881 = vmatprep.subr.bf16.mxu0 0
    %882 = vmatpush2.bf16.msra.mxu0 0
    %883 = vmatprep.subr.bf16.mxu0 0
    %884 = vmatpush2.bf16.msra.mxu0 0
    %885 = vmatprep.subr.bf16.mxu0 0
    %886 = vmatpush2.bf16.msra.mxu0 0
    %887 = vmatprep.subr.bf16.mxu0 0
    %888 = vmatpush2.bf16.msra.mxu0 0
    %889 = vmatprep.mubr.bf16.mxu0 0
    %890 = vmatmul.mubr.bf16.gmra.mxu0 %v805
    %v891 = vpop.f32.mrf.mxu0
    %v892 = vadd.f32 0.0, %v891
    %v893 = vpop.f32.mrf.mxu0
    %v894 = vpop.f32.mrf.mxu0
    %v895 = vadd.f32 0.0, %v894
    %v896 = vpop.f32.mrf.mxu0
    %897 = vmatprep.mubr.bf16.mxu0 0
    %898 = vmatmul.mubr.bf16.gmra.mxu0 %v806
    %v899 = vpop.f32.mrf.mxu0
    %v900 = vadd.f32 0.0, %v899
    %v901 = vpop.f32.mrf.mxu0
    %v902 = vpop.f32.mrf.mxu0
    %v903 = vadd.f32 0.0, %v902
    %v904 = vpop.f32.mrf.mxu0
    %905 = vdwg.mxu0
    %v906 = vadd.f32 %v723, %v892
    %v907 = vadd.f32 %v724, %v895
    %v908 = vadd.f32 %v725, %v900
    %v909 = vadd.f32 %v726, %v903
    %v910 = vld [vmem:[#allocation2 + $0x4] sm:$0xe]
    %v911 = vld [vmem:[#allocation2 + $0x14] sm:$0xe]
    %vm918 = vcmask 1042432
    %vm919 = vcmask 1046532
    %vm920 = vmor %vm918, %vm919
    %v921 = vrot.slane %v910, 5
    %v922 = vrot.slane %v921, 4
    %v923 = vrot.slane %v728, 5
    %v924 = vsel %vm920, %v922, %v923
    %v925 = vrot.slane %v923, 4
    %v926 = vrot.slane %v729, 5
    %v927 = vsel %vm920, %v925, %v926
    %v928 = vrot.slane %v911, 5
    %v929 = vrot.slane %v928, 4
    %v930 = vrot.slane %v731, 5
    %v931 = vsel %vm920, %v929, %v930
    %v932 = vrot.slane %v930, 4
    %v933 = vrot.slane %v732, 5
    %v934 = vsel %vm920, %v932, %v933
    %s935 = scalar_lea.vmem [#allocation7], 320
    %v936 = vld [vmem:[%s935] sm:$0xf]
    %v937 = vld [vmem:[%s935 + $0x4] sm:$0xf]
    %v938 = vld [vmem:[%s935 + $0x8] sm:$0xf]
    %v939 = vld [vmem:[%s935 + $0xc] sm:$0xf]
    %v940 = vld [vmem:[%s935 + $0x10] sm:$0xf]
    %v941 = vld [vmem:[%s935 + $0x14] sm:$0xf]
    %v942 = vld [vmem:[%s935 + $0x18] sm:$0xf]
    %v943 = vld [vmem:[%s935 + $0x1c] sm:$0xf]
    %v944 = vld [vmem:[%s935 + $0x20] sm:$0xf]
    %v945 = vld [vmem:[%s935 + $0x24] sm:$0xf]
    %v946 = vld [vmem:[%s935 + $0x28] sm:$0xf]
    %v947 = vld [vmem:[%s935 + $0x2c] sm:$0xf]
    %v948 = vld [vmem:[%s935 + $0x30] sm:$0xf]
    %v949 = vld [vmem:[%s935 + $0x34] sm:$0xf]
    %v950 = vld [vmem:[%s935 + $0x38] sm:$0xf]
    %v951 = vld [vmem:[%s935 + $0x3c] sm:$0xf]
    %v952 = vunpack.c.l.b16 %v924
    %v953 = vunpack.c.l.b16 %v927
    %v954 = vunpack.c.l.b16 %v931
    %v955 = vunpack.c.l.b16 %v934
    %v956 = vpack.c.b16 %v953, %v952
    %v957 = vpack.c.b16 %v955, %v954
    %v976 = vunpack.c.l.b16 %v936
    %v977 = vunpack.c.l.b16 %v937
    %v978 = vunpack.c.l.b16 %v938
    %v979 = vunpack.c.l.b16 %v939
    %v980 = vunpack.c.l.b16 %v940
    %v981 = vunpack.c.l.b16 %v941
    %v982 = vunpack.c.l.b16 %v942
    %v983 = vunpack.c.l.b16 %v943
    %v984 = vunpack.c.l.b16 %v944
    %v985 = vunpack.c.l.b16 %v945
    %v986 = vunpack.c.l.b16 %v946
    %v987 = vunpack.c.l.b16 %v947
    %v988 = vunpack.c.l.b16 %v948
    %v989 = vunpack.c.l.b16 %v949
    %v990 = vunpack.c.l.b16 %v950
    %v991 = vunpack.c.l.b16 %v951
    %v992 = vpack.c.b16 %v977, %v976
    %v993 = vpack.c.b16 %v979, %v978
    %v994 = vpack.c.b16 %v981, %v980
    %v995 = vpack.c.b16 %v983, %v982
    %v996 = vpack.c.b16 %v985, %v984
    %v997 = vpack.c.b16 %v987, %v986
    %v998 = vpack.c.b16 %v989, %v988
    %v999 = vpack.c.b16 %v991, %v990
    %1008 = vmatprep.subr.bf16.mxu0 0
    %1009 = vmatpush1.bf16.msra.mxu0 %v999
    %1010 = vmatprep.subr.bf16.mxu0 0
    %1011 = vmatpush1.bf16.msra.mxu0 %v998
    %1012 = vmatprep.subr.bf16.mxu0 0
    %1013 = vmatpush1.bf16.msra.mxu0 %v997
    %1014 = vmatprep.subr.bf16.mxu0 0
    %1015 = vmatpush1.bf16.msra.mxu0 %v996
    %1016 = vmatprep.subr.bf16.mxu0 0
    %1017 = vmatpush1.bf16.msra.mxu0 %v995
    %1018 = vmatprep.subr.bf16.mxu0 0
    %1019 = vmatpush1.bf16.msra.mxu0 %v994
    %1020 = vmatprep.subr.bf16.mxu0 0
    %1021 = vmatpush1.bf16.msra.mxu0 %v993
    %1022 = vmatprep.subr.bf16.mxu0 0
    %1023 = vmatpush1.bf16.msra.mxu0 %v992
    %1024 = vmatprep.subr.bf16.mxu0 0
    %1025 = vmatpush2.bf16.msra.mxu0 0
    %1026 = vmatprep.subr.bf16.mxu0 0
    %1027 = vmatpush2.bf16.msra.mxu0 0
    %1028 = vmatprep.subr.bf16.mxu0 0
    %1029 = vmatpush2.bf16.msra.mxu0 0
    %1030 = vmatprep.subr.bf16.mxu0 0
    %1031 = vmatpush2.bf16.msra.mxu0 0
    %1032 = vmatprep.subr.bf16.mxu0 0
    %1033 = vmatpush2.bf16.msra.mxu0 0
    %1034 = vmatprep.subr.bf16.mxu0 0
    %1035 = vmatpush2.bf16.msra.mxu0 0
    %1036 = vmatprep.subr.bf16.mxu0 0
    %1037 = vmatpush2.bf16.msra.mxu0 0
    %1038 = vmatprep.subr.bf16.mxu0 0
    %1039 = vmatpush2.bf16.msra.mxu0 0
    %1040 = vmatprep.mubr.bf16.mxu0 0
    %1041 = vmatmul.mubr.bf16.gmra.mxu0 %v956
    %v1042 = vpop.f32.mrf.mxu0
    %v1043 = vadd.f32 0.0, %v1042
    %v1044 = vpop.f32.mrf.mxu0
    %v1045 = vpop.f32.mrf.mxu0
    %v1046 = vadd.f32 0.0, %v1045
    %v1047 = vpop.f32.mrf.mxu0
    %1048 = vmatprep.mubr.bf16.mxu0 0
    %1049 = vmatmul.mubr.bf16.gmra.mxu0 %v957
    %v1050 = vpop.f32.mrf.mxu0
    %v1051 = vadd.f32 0.0, %v1050
    %v1052 = vpop.f32.mrf.mxu0
    %v1053 = vpop.f32.mrf.mxu0
    %v1054 = vadd.f32 0.0, %v1053
    %v1055 = vpop.f32.mrf.mxu0
    %1056 = vdwg.mxu0
    %v1057 = vadd.f32 %v906, %v1043
    %v1058 = vadd.f32 %v907, %v1046
    %v1059 = vadd.f32 %v908, %v1051
    %v1060 = vadd.f32 %v909, %v1054
    %v1061 = vld [vmem:[#allocation2 + $0xc] sm:$0x3]
    %v1062 = vld [vmem:[#allocation2 + $0x1c] sm:$0x3]
    %vm1063 = vsmask.f32 2304
    %vm1064 = vsmask.f32 6416
    %vm1065 = vmor %vm1063, %vm1064
    %v1067 = vshrl.u32 %v910, 16
    %v1069 = vrot.slane %v1067, 5
    %v1070 = vshll.u32 %v910, 16
    %v1072 = vrot.slane %v1070, 6
    %v1073 = vor.u32 %v1069, %v1072
    %v1074 = vrot.slane %v1073, 4
    %v1075 = vrot.slane %v750, 5
    %v1076 = vrot.slane %v746, 6
    %v1077 = vor.u32 %v1075, %v1076
    %v1078 = vsel %vm1065, %v1074, %v1077
    %v1079 = vrot.slane %v1077, 4
    %v1081 = vshrl.u32 %v1061, 16
    %v1083 = vrot.slane %v1081, 5
    %v1084 = vshll.u32 %v1061, 16
    %v1086 = vrot.slane %v1084, 6
    %v1087 = vor.u32 %v1083, %v1086
    %v1088 = vsel %vm1065, %v1079, %v1087
    %v1090 = vshrl.u32 %v911, 16
    %v1092 = vrot.slane %v1090, 5
    %v1093 = vshll.u32 %v911, 16
    %v1095 = vrot.slane %v1093, 6
    %v1096 = vor.u32 %v1092, %v1095
    %v1097 = vrot.slane %v1096, 4
    %v1098 = vrot.slane %v774, 5
    %v1099 = vrot.slane %v770, 6
    %v1100 = vor.u32 %v1098, %v1099
    %v1101 = vsel %vm1065, %v1097, %v1100
    %v1102 = vrot.slane %v1100, 4
    %v1104 = vshrl.u32 %v1062, 16
    %v1106 = vrot.slane %v1104, 5
    %v1107 = vshll.u32 %v1062, 16
    %v1109 = vrot.slane %v1107, 6
    %v1110 = vor.u32 %v1106, %v1109
    %v1111 = vsel %vm1065, %v1102, %v1110
    %s1112 = scalar_lea.vmem [#allocation7], 384
    %v1113 = vld [vmem:[%s1112] sm:$0xf]
    %v1114 = vld [vmem:[%s1112 + $0x4] sm:$0xf]
    %v1115 = vld [vmem:[%s1112 + $0x8] sm:$0xf]
    %v1116 = vld [vmem:[%s1112 + $0xc] sm:$0xf]
    %v1117 = vld [vmem:[%s1112 + $0x10] sm:$0xf]
    %v1118 = vld [vmem:[%s1112 + $0x14] sm:$0xf]
    %v1119 = vld [vmem:[%s1112 + $0x18] sm:$0xf]
    %v1120 = vld [vmem:[%s1112 + $0x1c] sm:$0xf]
    %v1121 = vld [vmem:[%s1112 + $0x20] sm:$0xf]
    %v1122 = vld [vmem:[%s1112 + $0x24] sm:$0xf]
    %v1123 = vld [vmem:[%s1112 + $0x28] sm:$0xf]
    %v1124 = vld [vmem:[%s1112 + $0x2c] sm:$0xf]
    %v1125 = vld [vmem:[%s1112 + $0x30] sm:$0xf]
    %v1126 = vld [vmem:[%s1112 + $0x34] sm:$0xf]
    %v1127 = vld [vmem:[%s1112 + $0x38] sm:$0xf]
    %v1128 = vld [vmem:[%s1112 + $0x3c] sm:$0xf]
    %v1129 = vunpack.c.l.b16 %v1078
    %v1130 = vunpack.c.l.b16 %v1088
    %v1131 = vunpack.c.l.b16 %v1101
    %v1132 = vunpack.c.l.b16 %v1111
    %v1133 = vpack.c.b16 %v1130, %v1129
    %v1134 = vpack.c.b16 %v1132, %v1131
    %v1153 = vunpack.c.l.b16 %v1113
    %v1154 = vunpack.c.l.b16 %v1114
    %v1155 = vunpack.c.l.b16 %v1115
    %v1156 = vunpack.c.l.b16 %v1116
    %v1157 = vunpack.c.l.b16 %v1117
    %v1158 = vunpack.c.l.b16 %v1118
    %v1159 = vunpack.c.l.b16 %v1119
    %v1160 = vunpack.c.l.b16 %v1120
    %v1161 = vunpack.c.l.b16 %v1121
    %v1162 = vunpack.c.l.b16 %v1122
    %v1163 = vunpack.c.l.b16 %v1123
    %v1164 = vunpack.c.l.b16 %v1124
    %v1165 = vunpack.c.l.b16 %v1125
    %v1166 = vunpack.c.l.b16 %v1126
    %v1167 = vunpack.c.l.b16 %v1127
    %v1168 = vunpack.c.l.b16 %v1128
    %v1169 = vpack.c.b16 %v1154, %v1153
    %v1170 = vpack.c.b16 %v1156, %v1155
    %v1171 = vpack.c.b16 %v1158, %v1157
    %v1172 = vpack.c.b16 %v1160, %v1159
    %v1173 = vpack.c.b16 %v1162, %v1161
    %v1174 = vpack.c.b16 %v1164, %v1163
    %v1175 = vpack.c.b16 %v1166, %v1165
    %v1176 = vpack.c.b16 %v1168, %v1167
    %1185 = vmatprep.subr.bf16.mxu0 0
    %1186 = vmatpush1.bf16.msra.mxu0 %v1176
    %1187 = vmatprep.subr.bf16.mxu0 0
    %1188 = vmatpush1.bf16.msra.mxu0 %v1175
    %1189 = vmatprep.subr.bf16.mxu0 0
    %1190 = vmatpush1.bf16.msra.mxu0 %v1174
    %1191 = vmatprep.subr.bf16.mxu0 0
    %1192 = vmatpush1.bf16.msra.mxu0 %v1173
    %1193 = vmatprep.subr.bf16.mxu0 0
    %1194 = vmatpush1.bf16.msra.mxu0 %v1172
    %1195 = vmatprep.subr.bf16.mxu0 0
    %1196 = vmatpush1.bf16.msra.mxu0 %v1171
    %1197 = vmatprep.subr.bf16.mxu0 0
    %1198 = vmatpush1.bf16.msra.mxu0 %v1170
    %1199 = vmatprep.subr.bf16.mxu0 0
    %1200 = vmatpush1.bf16.msra.mxu0 %v1169
    %1201 = vmatprep.subr.bf16.mxu0 0
    %1202 = vmatpush2.bf16.msra.mxu0 0
    %1203 = vmatprep.subr.bf16.mxu0 0
    %1204 = vmatpush2.bf16.msra.mxu0 0
    %1205 = vmatprep.subr.bf16.mxu0 0
    %1206 = vmatpush2.bf16.msra.mxu0 0
    %1207 = vmatprep.subr.bf16.mxu0 0
    %1208 = vmatpush2.bf16.msra.mxu0 0
    %1209 = vmatprep.subr.bf16.mxu0 0
    %1210 = vmatpush2.bf16.msra.mxu0 0
    %1211 = vmatprep.subr.bf16.mxu0 0
    %1212 = vmatpush2.bf16.msra.mxu0 0
    %1213 = vmatprep.subr.bf16.mxu0 0
    %1214 = vmatpush2.bf16.msra.mxu0 0
    %1215 = vmatprep.subr.bf16.mxu0 0
    %1216 = vmatpush2.bf16.msra.mxu0 0
    %1217 = vmatprep.mubr.bf16.mxu0 0
    %1218 = vmatmul.mubr.bf16.gmra.mxu0 %v1133
    %v1219 = vpop.f32.mrf.mxu0
    %v1220 = vadd.f32 0.0, %v1219
    %v1221 = vpop.f32.mrf.mxu0
    %v1222 = vpop.f32.mrf.mxu0
    %v1223 = vadd.f32 0.0, %v1222
    %v1224 = vpop.f32.mrf.mxu0
    %1225 = vmatprep.mubr.bf16.mxu0 0
    %1226 = vmatmul.mubr.bf16.gmra.mxu0 %v1134
    %v1227 = vpop.f32.mrf.mxu0
    %v1228 = vadd.f32 0.0, %v1227
    %v1229 = vpop.f32.mrf.mxu0
    %v1230 = vpop.f32.mrf.mxu0
    %v1231 = vadd.f32 0.0, %v1230
    %v1232 = vpop.f32.mrf.mxu0
    %1233 = vdwg.mxu0
    %v1234 = vadd.f32 %v1057, %v1220
    %v1235 = vadd.f32 %v1058, %v1223
    %v1236 = vadd.f32 %v1059, %v1228
    %v1237 = vadd.f32 %v1060, %v1231
    %v1238 = vld [vmem:[%s2] sm:$0x1]
    %v1240 = vlaneseq
    %v1241 = vshrl.u32 %v1240, 7
    %v1242 = vsub.s32 0, %v1241
    %v1243 = vrot.slane %v1238, %v1242
    %v1245 = vmul.f32 %v1234, %v1243
    %v1246 = vmul.f32 %v1235, %v1243
    %v1247 = vmul.f32 %v1236, %v1243
    %v1248 = vmul.f32 %v1237, %v1243
    %v1249 = vld [vmem:[%s3] sm:$0x1]
    %v1251 = vlaneseq
    %v1252 = vshrl.u32 %v1251, 7
    %v1253 = vsub.s32 0, %v1252
    %v1254 = vrot.slane %v1249, %v1253
    %v1256 = vadd.f32 %v1245, %v1254
    %v1257 = vadd.f32 %v1246, %v1254
    %v1258 = vadd.f32 %v1247, %v1254
    %v1259 = vadd.f32 %v1248, %v1254
    %v1260 = vmax.f32 %v1256, 0.0
    %v1261 = vmax.f32 %v1257, 0.0
    %v1262 = vmax.f32 %v1258, 0.0
    %v1263 = vmax.f32 %v1259, 0.0
    %v1264 = vpack.c.bf16 %v1261, %v1260
    %v1265 = vpack.c.bf16 %v1263, %v1262
    %v1268 = vunpack.c.l.b16 %v1264
    %v1269 = vunpack.c.h.b16 %v1264
    %v1270 = vunpack.c.l.b16 %v1265
    %v1271 = vunpack.c.h.b16 %v1265
    %v1272 = vpack.c.b16 %v1268, %v1268
    %v1273 = vpack.c.b16 %v1269, %v1269
    %v1274 = vpack.c.b16 %v1270, %v1270
    %v1275 = vpack.c.b16 %v1271, %v1271
    %1280 = vst [vmem:[#allocation3 + $0x4] sm:$0xf] %v1272
    %1281 = vst [vmem:[#allocation3 + $0x8] sm:$0xf] %v1273
    %1282 = vst [vmem:[#allocation3 + $0x14] sm:$0xf] %v1274
    %1283 = vst [vmem:[#allocation3 + $0x18] sm:$0xf] %v1275
    %v1284 = vld [vmem:[#allocation3] sm:$0xc]
    %v1285 = vld [vmem:[#allocation3 + $0x4] sm:$0xf]
    %v1286 = vld [vmem:[#allocation3 + $0x8] sm:$0x7]
    %v1287 = vld [vmem:[#allocation3 + $0x10] sm:$0xc]
    %v1288 = vld [vmem:[#allocation3 + $0x14] sm:$0xf]
    %v1289 = vld [vmem:[#allocation3 + $0x18] sm:$0x7]
    %v1291 = vshrl.u32 %v1284, 16
    %v1293 = vrot.slane %v1291, 6
    %v1294 = vshll.u32 %v1284, 16
    %v1296 = vrot.slane %v1294, 7
    %v1297 = vor.u32 %v1293, %v1296
    %v1298 = vrot.slane %v1297, 4
    %v1300 = vshrl.u32 %v1285, 16
    %v1302 = vrot.slane %v1300, 6
    %v1303 = vshll.u32 %v1285, 16
    %v1305 = vrot.slane %v1303, 7
    %v1306 = vor.u32 %v1302, %v1305
    %v1307 = vsel %vm109, %v1298, %v1306
    %v1308 = vrot.slane %v1306, 4
    %v1310 = vshrl.u32 %v1286, 16
    %v1312 = vrot.slane %v1310, 6
    %v1313 = vshll.u32 %v1286, 16
    %v1315 = vrot.slane %v1313, 7
    %v1316 = vor.u32 %v1312, %v1315
    %v1317 = vsel %vm109, %v1308, %v1316
    %v1319 = vshrl.u32 %v1287, 16
    %v1321 = vrot.slane %v1319, 6
    %v1322 = vshll.u32 %v1287, 16
    %v1324 = vrot.slane %v1322, 7
    %v1325 = vor.u32 %v1321, %v1324
    %v1326 = vrot.slane %v1325, 4
    %v1328 = vshrl.u32 %v1288, 16
    %v1330 = vrot.slane %v1328, 6
    %v1331 = vshll.u32 %v1288, 16
    %v1333 = vrot.slane %v1331, 7
    %v1334 = vor.u32 %v1330, %v1333
    %v1335 = vsel %vm109, %v1326, %v1334
    %v1336 = vrot.slane %v1334, 4
    %v1338 = vshrl.u32 %v1289, 16
    %v1340 = vrot.slane %v1338, 6
    %v1341 = vshll.u32 %v1289, 16
    %v1343 = vrot.slane %v1341, 7
    %v1344 = vor.u32 %v1340, %v1343
    %v1345 = vsel %vm109, %v1336, %v1344
    %v1346 = vld [vmem:[#allocation9] sm:$0xf]
    %v1347 = vld [vmem:[#allocation9 + $0x4] sm:$0xf]
    %v1348 = vld [vmem:[#allocation9 + $0x8] sm:$0xf]
    %v1349 = vld [vmem:[#allocation9 + $0xc] sm:$0xf]
    %v1350 = vld [vmem:[#allocation9 + $0x10] sm:$0xf]
    %v1351 = vld [vmem:[#allocation9 + $0x14] sm:$0xf]
    %v1352 = vld [vmem:[#allocation9 + $0x18] sm:$0xf]
    %v1353 = vld [vmem:[#allocation9 + $0x1c] sm:$0xf]
    %v1354 = vld [vmem:[#allocation9 + $0x20] sm:$0xf]
    %v1355 = vld [vmem:[#allocation9 + $0x24] sm:$0xf]
    %v1356 = vld [vmem:[#allocation9 + $0x28] sm:$0xf]
    %v1357 = vld [vmem:[#allocation9 + $0x2c] sm:$0xf]
    %v1358 = vld [vmem:[#allocation9 + $0x30] sm:$0xf]
    %v1359 = vld [vmem:[#allocation9 + $0x34] sm:$0xf]
    %v1360 = vld [vmem:[#allocation9 + $0x38] sm:$0xf]
    %v1361 = vld [vmem:[#allocation9 + $0x3c] sm:$0xf]
    %v1362 = vld [vmem:[#allocation3] sm:$0x8]
    %v1363 = vld [vmem:[#allocation3 + $0x10] sm:$0x8]
    %v1370 = vrot.slane %v1362, 7
    %v1371 = vrot.slane %v1370, 4
    %v1372 = vrot.slane %v1285, 7
    %v1373 = vsel %vm192, %v1371, %v1372
    %v1374 = vrot.slane %v1372, 4
    %v1375 = vrot.slane %v1286, 7
    %v1376 = vsel %vm192, %v1374, %v1375
    %v1377 = vrot.slane %v1363, 7
    %v1378 = vrot.slane %v1377, 4
    %v1379 = vrot.slane %v1288, 7
    %v1380 = vsel %vm192, %v1378, %v1379
    %v1381 = vrot.slane %v1379, 4
    %v1382 = vrot.slane %v1289, 7
    %v1383 = vsel %vm192, %v1381, %v1382
    %s1384 = scalar_lea.vmem [#allocation9], 64
    %v1385 = vld [vmem:[%s1384] sm:$0xf]
    %v1386 = vld [vmem:[%s1384 + $0x4] sm:$0xf]
    %v1387 = vld [vmem:[%s1384 + $0x8] sm:$0xf]
    %v1388 = vld [vmem:[%s1384 + $0xc] sm:$0xf]
    %v1389 = vld [vmem:[%s1384 + $0x10] sm:$0xf]
    %v1390 = vld [vmem:[%s1384 + $0x14] sm:$0xf]
    %v1391 = vld [vmem:[%s1384 + $0x18] sm:$0xf]
    %v1392 = vld [vmem:[%s1384 + $0x1c] sm:$0xf]
    %v1393 = vld [vmem:[%s1384 + $0x20] sm:$0xf]
    %v1394 = vld [vmem:[%s1384 + $0x24] sm:$0xf]
    %v1395 = vld [vmem:[%s1384 + $0x28] sm:$0xf]
    %v1396 = vld [vmem:[%s1384 + $0x2c] sm:$0xf]
    %v1397 = vld [vmem:[%s1384 + $0x30] sm:$0xf]
    %v1398 = vld [vmem:[%s1384 + $0x34] sm:$0xf]
    %v1399 = vld [vmem:[%s1384 + $0x38] sm:$0xf]
    %v1400 = vld [vmem:[%s1384 + $0x3c] sm:$0xf]
    %v1401 = vunpack.c.l.b16 %v1373
    %v1402 = vunpack.c.l.b16 %v1376
    %v1403 = vunpack.c.l.b16 %v1380
    %v1404 = vunpack.c.l.b16 %v1383
    %v1405 = vpack.c.b16 %v1402, %v1401
    %v1406 = vpack.c.b16 %v1404, %v1403
    %v1425 = vunpack.c.l.b16 %v1385
    %v1426 = vunpack.c.l.b16 %v1386
    %v1427 = vunpack.c.l.b16 %v1387
    %v1428 = vunpack.c.l.b16 %v1388
    %v1429 = vunpack.c.l.b16 %v1389
    %v1430 = vunpack.c.l.b16 %v1390
    %v1431 = vunpack.c.l.b16 %v1391
    %v1432 = vunpack.c.l.b16 %v1392
    %v1433 = vunpack.c.l.b16 %v1393
    %v1434 = vunpack.c.l.b16 %v1394
    %v1435 = vunpack.c.l.b16 %v1395
    %v1436 = vunpack.c.l.b16 %v1396
    %v1437 = vunpack.c.l.b16 %v1397
    %v1438 = vunpack.c.l.b16 %v1398
    %v1439 = vunpack.c.l.b16 %v1399
    %v1440 = vunpack.c.l.b16 %v1400
    %v1441 = vpack.c.b16 %v1426, %v1425
    %v1442 = vpack.c.b16 %v1428, %v1427
    %v1443 = vpack.c.b16 %v1430, %v1429
    %v1444 = vpack.c.b16 %v1432, %v1431
    %v1445 = vpack.c.b16 %v1434, %v1433
    %v1446 = vpack.c.b16 %v1436, %v1435
    %v1447 = vpack.c.b16 %v1438, %v1437
    %v1448 = vpack.c.b16 %v1440, %v1439
    %1457 = vmatprep.subr.bf16.mxu0 0
    %1458 = vmatpush1.bf16.msra.mxu0 %v1448
    %1459 = vmatprep.subr.bf16.mxu0 0
    %1460 = vmatpush1.bf16.msra.mxu0 %v1447
    %1461 = vmatprep.subr.bf16.mxu0 0
    %1462 = vmatpush1.bf16.msra.mxu0 %v1446
    %1463 = vmatprep.subr.bf16.mxu0 0
    %1464 = vmatpush1.bf16.msra.mxu0 %v1445
    %1465 = vmatprep.subr.bf16.mxu0 0
    %1466 = vmatpush1.bf16.msra.mxu0 %v1444
    %1467 = vmatprep.subr.bf16.mxu0 0
    %1468 = vmatpush1.bf16.msra.mxu0 %v1443
    %1469 = vmatprep.subr.bf16.mxu0 0
    %1470 = vmatpush1.bf16.msra.mxu0 %v1442
    %1471 = vmatprep.subr.bf16.mxu0 0
    %1472 = vmatpush1.bf16.msra.mxu0 %v1441
    %1473 = vmatprep.subr.bf16.mxu0 0
    %1474 = vmatpush2.bf16.msra.mxu0 0
    %1475 = vmatprep.subr.bf16.mxu0 0
    %1476 = vmatpush2.bf16.msra.mxu0 0
    %1477 = vmatprep.subr.bf16.mxu0 0
    %1478 = vmatpush2.bf16.msra.mxu0 0
    %1479 = vmatprep.subr.bf16.mxu0 0
    %1480 = vmatpush2.bf16.msra.mxu0 0
    %1481 = vmatprep.subr.bf16.mxu0 0
    %1482 = vmatpush2.bf16.msra.mxu0 0
    %1483 = vmatprep.subr.bf16.mxu0 0
    %1484 = vmatpush2.bf16.msra.mxu0 0
    %1485 = vmatprep.subr.bf16.mxu0 0
    %1486 = vmatpush2.bf16.msra.mxu0 0
    %1487 = vmatprep.subr.bf16.mxu0 0
    %1488 = vmatpush2.bf16.msra.mxu0 0
    %1489 = vmatprep.mubr.bf16.mxu0 0
    %1490 = vmatmul.mubr.bf16.gmra.mxu0 %v1405
    %v1491 = vpop.f32.mrf.mxu0
    %v1492 = vadd.f32 0.0, %v1491
    %v1493 = vpop.f32.mrf.mxu0
    %v1494 = vpop.f32.mrf.mxu0
    %v1495 = vadd.f32 0.0, %v1494
    %v1496 = vpop.f32.mrf.mxu0
    %1497 = vmatprep.mubr.bf16.mxu0 0
    %1498 = vmatmul.mubr.bf16.gmra.mxu0 %v1406
    %v1499 = vpop.f32.mrf.mxu0
    %v1500 = vadd.f32 0.0, %v1499
    %v1501 = vpop.f32.mrf.mxu0
    %v1502 = vpop.f32.mrf.mxu0
    %v1503 = vadd.f32 0.0, %v1502
    %v1504 = vpop.f32.mrf.mxu0
    %1505 = vdwg.mxu0
    %v1506 = vunpack.c.l.b16 %v1307
    %v1507 = vunpack.c.l.b16 %v1317
    %v1508 = vunpack.c.l.b16 %v1335
    %v1509 = vunpack.c.l.b16 %v1345
    %v1510 = vpack.c.b16 %v1507, %v1506
    %v1511 = vpack.c.b16 %v1509, %v1508
    %v1530 = vunpack.c.l.b16 %v1346
    %v1531 = vunpack.c.l.b16 %v1347
    %v1532 = vunpack.c.l.b16 %v1348
    %v1533 = vunpack.c.l.b16 %v1349
    %v1534 = vunpack.c.l.b16 %v1350
    %v1535 = vunpack.c.l.b16 %v1351
    %v1536 = vunpack.c.l.b16 %v1352
    %v1537 = vunpack.c.l.b16 %v1353
    %v1538 = vunpack.c.l.b16 %v1354
    %v1539 = vunpack.c.l.b16 %v1355
    %v1540 = vunpack.c.l.b16 %v1356
    %v1541 = vunpack.c.l.b16 %v1357
    %v1542 = vunpack.c.l.b16 %v1358
    %v1543 = vunpack.c.l.b16 %v1359
    %v1544 = vunpack.c.l.b16 %v1360
    %v1545 = vunpack.c.l.b16 %v1361
    %v1546 = vpack.c.b16 %v1531, %v1530
    %v1547 = vpack.c.b16 %v1533, %v1532
    %v1548 = vpack.c.b16 %v1535, %v1534
    %v1549 = vpack.c.b16 %v1537, %v1536
    %v1550 = vpack.c.b16 %v1539, %v1538
    %v1551 = vpack.c.b16 %v1541, %v1540
    %v1552 = vpack.c.b16 %v1543, %v1542
    %v1553 = vpack.c.b16 %v1545, %v1544
    %1562 = vmatprep.subr.bf16.mxu0 0
    %1563 = vmatpush1.bf16.msra.mxu0 %v1553
    %1564 = vmatprep.subr.bf16.mxu0 0
    %1565 = vmatpush1.bf16.msra.mxu0 %v1552
    %1566 = vmatprep.subr.bf16.mxu0 0
    %1567 = vmatpush1.bf16.msra.mxu0 %v1551
    %1568 = vmatprep.subr.bf16.mxu0 0
    %1569 = vmatpush1.bf16.msra.mxu0 %v1550
    %1570 = vmatprep.subr.bf16.mxu0 0
    %1571 = vmatpush1.bf16.msra.mxu0 %v1549
    %1572 = vmatprep.subr.bf16.mxu0 0
    %1573 = vmatpush1.bf16.msra.mxu0 %v1548
    %1574 = vmatprep.subr.bf16.mxu0 0
    %1575 = vmatpush1.bf16.msra.mxu0 %v1547
    %1576 = vmatprep.subr.bf16.mxu0 0
    %1577 = vmatpush1.bf16.msra.mxu0 %v1546
    %1578 = vmatprep.subr.bf16.mxu0 0
    %1579 = vmatpush2.bf16.msra.mxu0 0
    %1580 = vmatprep.subr.bf16.mxu0 0
    %1581 = vmatpush2.bf16.msra.mxu0 0
    %1582 = vmatprep.subr.bf16.mxu0 0
    %1583 = vmatpush2.bf16.msra.mxu0 0
    %1584 = vmatprep.subr.bf16.mxu0 0
    %1585 = vmatpush2.bf16.msra.mxu0 0
    %1586 = vmatprep.subr.bf16.mxu0 0
    %1587 = vmatpush2.bf16.msra.mxu0 0
    %1588 = vmatprep.subr.bf16.mxu0 0
    %1589 = vmatpush2.bf16.msra.mxu0 0
    %1590 = vmatprep.subr.bf16.mxu0 0
    %1591 = vmatpush2.bf16.msra.mxu0 0
    %1592 = vmatprep.subr.bf16.mxu0 0
    %1593 = vmatpush2.bf16.msra.mxu0 0
    %1594 = vmatprep.mubr.bf16.mxu0 0
    %1595 = vmatmul.mubr.bf16.gmra.mxu0 %v1510
    %v1596 = vpop.f32.mrf.mxu0
    %v1597 = vadd.f32 %v1492, %v1596
    %v1598 = vpop.f32.mrf.mxu0
    %v1599 = vpop.f32.mrf.mxu0
    %v1600 = vadd.f32 %v1495, %v1599
    %v1601 = vpop.f32.mrf.mxu0
    %1602 = vmatprep.mubr.bf16.mxu0 0
    %1603 = vmatmul.mubr.bf16.gmra.mxu0 %v1511
    %v1604 = vpop.f32.mrf.mxu0
    %v1605 = vadd.f32 %v1500, %v1604
    %v1606 = vpop.f32.mrf.mxu0
    %v1607 = vpop.f32.mrf.mxu0
    %v1608 = vadd.f32 %v1503, %v1607
    %v1609 = vpop.f32.mrf.mxu0
    %1610 = vdwg.mxu0
    %v1611 = vld [vmem:[#allocation3 + $0x8] sm:$0xf]
    %v1612 = vld [vmem:[#allocation3 + $0x18] sm:$0xf]
    %v1614 = vshrl.u32 %v1362, 16
    %v1616 = vrot.slane %v1614, 7
    %v1617 = vrot.slane %v1616, 4
    %v1618 = vrot.slane %v1300, 7
    %v1619 = vor.u32 %v1618, %v1303
    %v1620 = vsel %vm438, %v1617, %v1619
    %v1621 = vrot.slane %v1618, 4
    %v1623 = vshrl.u32 %v1611, 16
    %v1625 = vrot.slane %v1623, 7
    %v1626 = vshll.u32 %v1611, 16
    %v1628 = vor.u32 %v1625, %v1626
    %v1629 = vsel %vm438, %v1621, %v1628
    %v1631 = vshrl.u32 %v1363, 16
    %v1633 = vrot.slane %v1631, 7
    %v1634 = vrot.slane %v1633, 4
    %v1635 = vrot.slane %v1328, 7
    %v1636 = vor.u32 %v1635, %v1331
    %v1637 = vsel %vm438, %v1634, %v1636
    %v1638 = vrot.slane %v1635, 4
    %v1640 = vshrl.u32 %v1612, 16
    %v1642 = vrot.slane %v1640, 7
    %v1643 = vshll.u32 %v1612, 16
    %v1645 = vor.u32 %v1642, %v1643
    %v1646 = vsel %vm438, %v1638, %v1645
    %s1647 = scalar_lea.vmem [#allocation9], 128
    %v1648 = vld [vmem:[%s1647] sm:$0xf]
    %v1649 = vld [vmem:[%s1647 + $0x4] sm:$0xf]
    %v1650 = vld [vmem:[%s1647 + $0x8] sm:$0xf]
    %v1651 = vld [vmem:[%s1647 + $0xc] sm:$0xf]
    %v1652 = vld [vmem:[%s1647 + $0x10] sm:$0xf]
    %v1653 = vld [vmem:[%s1647 + $0x14] sm:$0xf]
    %v1654 = vld [vmem:[%s1647 + $0x18] sm:$0xf]
    %v1655 = vld [vmem:[%s1647 + $0x1c] sm:$0xf]
    %v1656 = vld [vmem:[%s1647 + $0x20] sm:$0xf]
    %v1657 = vld [vmem:[%s1647 + $0x24] sm:$0xf]
    %v1658 = vld [vmem:[%s1647 + $0x28] sm:$0xf]
    %v1659 = vld [vmem:[%s1647 + $0x2c] sm:$0xf]
    %v1660 = vld [vmem:[%s1647 + $0x30] sm:$0xf]
    %v1661 = vld [vmem:[%s1647 + $0x34] sm:$0xf]
    %v1662 = vld [vmem:[%s1647 + $0x38] sm:$0xf]
    %v1663 = vld [vmem:[%s1647 + $0x3c] sm:$0xf]
    %v1664 = vunpack.c.l.b16 %v1620
    %v1665 = vunpack.c.l.b16 %v1629
    %v1666 = vunpack.c.l.b16 %v1637
    %v1667 = vunpack.c.l.b16 %v1646
    %v1668 = vpack.c.b16 %v1665, %v1664
    %v1669 = vpack.c.b16 %v1667, %v1666
    %v1688 = vunpack.c.l.b16 %v1648
    %v1689 = vunpack.c.l.b16 %v1649
    %v1690 = vunpack.c.l.b16 %v1650
    %v1691 = vunpack.c.l.b16 %v1651
    %v1692 = vunpack.c.l.b16 %v1652
    %v1693 = vunpack.c.l.b16 %v1653
    %v1694 = vunpack.c.l.b16 %v1654
    %v1695 = vunpack.c.l.b16 %v1655
    %v1696 = vunpack.c.l.b16 %v1656
    %v1697 = vunpack.c.l.b16 %v1657
    %v1698 = vunpack.c.l.b16 %v1658
    %v1699 = vunpack.c.l.b16 %v1659
    %v1700 = vunpack.c.l.b16 %v1660
    %v1701 = vunpack.c.l.b16 %v1661
    %v1702 = vunpack.c.l.b16 %v1662
    %v1703 = vunpack.c.l.b16 %v1663
    %v1704 = vpack.c.b16 %v1689, %v1688
    %v1705 = vpack.c.b16 %v1691, %v1690
    %v1706 = vpack.c.b16 %v1693, %v1692
    %v1707 = vpack.c.b16 %v1695, %v1694
    %v1708 = vpack.c.b16 %v1697, %v1696
    %v1709 = vpack.c.b16 %v1699, %v1698
    %v1710 = vpack.c.b16 %v1701, %v1700
    %v1711 = vpack.c.b16 %v1703, %v1702
    %1720 = vmatprep.subr.bf16.mxu0 0
    %1721 = vmatpush1.bf16.msra.mxu0 %v1711
    %1722 = vmatprep.subr.bf16.mxu0 0
    %1723 = vmatpush1.bf16.msra.mxu0 %v1710
    %1724 = vmatprep.subr.bf16.mxu0 0
    %1725 = vmatpush1.bf16.msra.mxu0 %v1709
    %1726 = vmatprep.subr.bf16.mxu0 0
    %1727 = vmatpush1.bf16.msra.mxu0 %v1708
    %1728 = vmatprep.subr.bf16.mxu0 0
    %1729 = vmatpush1.bf16.msra.mxu0 %v1707
    %1730 = vmatprep.subr.bf16.mxu0 0
    %1731 = vmatpush1.bf16.msra.mxu0 %v1706
    %1732 = vmatprep.subr.bf16.mxu0 0
    %1733 = vmatpush1.bf16.msra.mxu0 %v1705
    %1734 = vmatprep.subr.bf16.mxu0 0
    %1735 = vmatpush1.bf16.msra.mxu0 %v1704
    %1736 = vmatprep.subr.bf16.mxu0 0
    %1737 = vmatpush2.bf16.msra.mxu0 0
    %1738 = vmatprep.subr.bf16.mxu0 0
    %1739 = vmatpush2.bf16.msra.mxu0 0
    %1740 = vmatprep.subr.bf16.mxu0 0
    %1741 = vmatpush2.bf16.msra.mxu0 0
    %1742 = vmatprep.subr.bf16.mxu0 0
    %1743 = vmatpush2.bf16.msra.mxu0 0
    %1744 = vmatprep.subr.bf16.mxu0 0
    %1745 = vmatpush2.bf16.msra.mxu0 0
    %1746 = vmatprep.subr.bf16.mxu0 0
    %1747 = vmatpush2.bf16.msra.mxu0 0
    %1748 = vmatprep.subr.bf16.mxu0 0
    %1749 = vmatpush2.bf16.msra.mxu0 0
    %1750 = vmatprep.subr.bf16.mxu0 0
    %1751 = vmatpush2.bf16.msra.mxu0 0
    %1752 = vmatprep.mubr.bf16.mxu0 0
    %1753 = vmatmul.mubr.bf16.gmra.mxu0 %v1668
    %v1754 = vpop.f32.mrf.mxu0
    %v1755 = vadd.f32 0.0, %v1754
    %v1756 = vpop.f32.mrf.mxu0
    %v1757 = vpop.f32.mrf.mxu0
    %v1758 = vadd.f32 0.0, %v1757
    %v1759 = vpop.f32.mrf.mxu0
    %1760 = vmatprep.mubr.bf16.mxu0 0
    %1761 = vmatmul.mubr.bf16.gmra.mxu0 %v1669
    %v1762 = vpop.f32.mrf.mxu0
    %v1763 = vadd.f32 0.0, %v1762
    %v1764 = vpop.f32.mrf.mxu0
    %v1765 = vpop.f32.mrf.mxu0
    %v1766 = vadd.f32 0.0, %v1765
    %v1767 = vpop.f32.mrf.mxu0
    %1768 = vdwg.mxu0
    %v1769 = vadd.f32 %v1597, %v1755
    %v1770 = vadd.f32 %v1600, %v1758
    %v1771 = vadd.f32 %v1605, %v1763
    %v1772 = vadd.f32 %v1608, %v1766
    %s1773 = scalar_lea.vmem [#allocation9], 192
    %v1774 = vld [vmem:[%s1773] sm:$0xf]
    %v1775 = vld [vmem:[%s1773 + $0x4] sm:$0xf]
    %v1776 = vld [vmem:[%s1773 + $0x8] sm:$0xf]
    %v1777 = vld [vmem:[%s1773 + $0xc] sm:$0xf]
    %v1778 = vld [vmem:[%s1773 + $0x10] sm:$0xf]
    %v1779 = vld [vmem:[%s1773 + $0x14] sm:$0xf]
    %v1780 = vld [vmem:[%s1773 + $0x18] sm:$0xf]
    %v1781 = vld [vmem:[%s1773 + $0x1c] sm:$0xf]
    %v1782 = vld [vmem:[%s1773 + $0x20] sm:$0xf]
    %v1783 = vld [vmem:[%s1773 + $0x24] sm:$0xf]
    %v1784 = vld [vmem:[%s1773 + $0x28] sm:$0xf]
    %v1785 = vld [vmem:[%s1773 + $0x2c] sm:$0xf]
    %v1786 = vld [vmem:[%s1773 + $0x30] sm:$0xf]
    %v1787 = vld [vmem:[%s1773 + $0x34] sm:$0xf]
    %v1788 = vld [vmem:[%s1773 + $0x38] sm:$0xf]
    %v1789 = vld [vmem:[%s1773 + $0x3c] sm:$0xf]
    %v1792 = vunpack.c.l.b16 %v1285
    %v1793 = vunpack.c.l.b16 %v1611
    %v1794 = vunpack.c.l.b16 %v1288
    %v1795 = vunpack.c.l.b16 %v1612
    %v1796 = vpack.c.b16 %v1793, %v1792
    %v1797 = vpack.c.b16 %v1795, %v1794
    %v1816 = vunpack.c.l.b16 %v1774
    %v1817 = vunpack.c.l.b16 %v1775
    %v1818 = vunpack.c.l.b16 %v1776
    %v1819 = vunpack.c.l.b16 %v1777
    %v1820 = vunpack.c.l.b16 %v1778
    %v1821 = vunpack.c.l.b16 %v1779
    %v1822 = vunpack.c.l.b16 %v1780
    %v1823 = vunpack.c.l.b16 %v1781
    %v1824 = vunpack.c.l.b16 %v1782
    %v1825 = vunpack.c.l.b16 %v1783
    %v1826 = vunpack.c.l.b16 %v1784
    %v1827 = vunpack.c.l.b16 %v1785
    %v1828 = vunpack.c.l.b16 %v1786
    %v1829 = vunpack.c.l.b16 %v1787
    %v1830 = vunpack.c.l.b16 %v1788
    %v1831 = vunpack.c.l.b16 %v1789
    %v1832 = vpack.c.b16 %v1817, %v1816
    %v1833 = vpack.c.b16 %v1819, %v1818
    %v1834 = vpack.c.b16 %v1821, %v1820
    %v1835 = vpack.c.b16 %v1823, %v1822
    %v1836 = vpack.c.b16 %v1825, %v1824
    %v1837 = vpack.c.b16 %v1827, %v1826
    %v1838 = vpack.c.b16 %v1829, %v1828
    %v1839 = vpack.c.b16 %v1831, %v1830
    %1848 = vmatprep.subr.bf16.mxu0 0
    %1849 = vmatpush1.bf16.msra.mxu0 %v1839
    %1850 = vmatprep.subr.bf16.mxu0 0
    %1851 = vmatpush1.bf16.msra.mxu0 %v1838
    %1852 = vmatprep.subr.bf16.mxu0 0
    %1853 = vmatpush1.bf16.msra.mxu0 %v1837
    %1854 = vmatprep.subr.bf16.mxu0 0
    %1855 = vmatpush1.bf16.msra.mxu0 %v1836
    %1856 = vmatprep.subr.bf16.mxu0 0
    %1857 = vmatpush1.bf16.msra.mxu0 %v1835
    %1858 = vmatprep.subr.bf16.mxu0 0
    %1859 = vmatpush1.bf16.msra.mxu0 %v1834
    %1860 = vmatprep.subr.bf16.mxu0 0
    %1861 = vmatpush1.bf16.msra.mxu0 %v1833
    %1862 = vmatprep.subr.bf16.mxu0 0
    %1863 = vmatpush1.bf16.msra.mxu0 %v1832
    %1864 = vmatprep.subr.bf16.mxu0 0
    %1865 = vmatpush2.bf16.msra.mxu0 0
    %1866 = vmatprep.subr.bf16.mxu0 0
    %1867 = vmatpush2.bf16.msra.mxu0 0
    %1868 = vmatprep.subr.bf16.mxu0 0
    %1869 = vmatpush2.bf16.msra.mxu0 0
    %1870 = vmatprep.subr.bf16.mxu0 0
    %1871 = vmatpush2.bf16.msra.mxu0 0
    %1872 = vmatprep.subr.bf16.mxu0 0
    %1873 = vmatpush2.bf16.msra.mxu0 0
    %1874 = vmatprep.subr.bf16.mxu0 0
    %1875 = vmatpush2.bf16.msra.mxu0 0
    %1876 = vmatprep.subr.bf16.mxu0 0
    %1877 = vmatpush2.bf16.msra.mxu0 0
    %1878 = vmatprep.subr.bf16.mxu0 0
    %1879 = vmatpush2.bf16.msra.mxu0 0
    %1880 = vmatprep.mubr.bf16.mxu0 0
    %1881 = vmatmul.mubr.bf16.gmra.mxu0 %v1796
    %v1882 = vpop.f32.mrf.mxu0
    %v1883 = vadd.f32 0.0, %v1882
    %v1884 = vpop.f32.mrf.mxu0
    %v1885 = vpop.f32.mrf.mxu0
    %v1886 = vadd.f32 0.0, %v1885
    %v1887 = vpop.f32.mrf.mxu0
    %1888 = vmatprep.mubr.bf16.mxu0 0
    %1889 = vmatmul.mubr.bf16.gmra.mxu0 %v1797
    %v1890 = vpop.f32.mrf.mxu0
    %v1891 = vadd.f32 0.0, %v1890
    %v1892 = vpop.f32.mrf.mxu0
    %v1893 = vpop.f32.mrf.mxu0
    %v1894 = vadd.f32 0.0, %v1893
    %v1895 = vpop.f32.mrf.mxu0
    %1896 = vdwg.mxu0
    %v1897 = vadd.f32 %v1769, %v1883
    %v1898 = vadd.f32 %v1770, %v1886
    %v1899 = vadd.f32 %v1771, %v1891
    %v1900 = vadd.f32 %v1772, %v1894
    %v1901 = vld [vmem:[#allocation3 + $0x4] sm:$0xf]
    %v1902 = vld [vmem:[#allocation3 + $0x8] sm:$0xf]
    %v1903 = vld [vmem:[#allocation3 + $0xc] sm:$0x1]
    %v1904 = vld [vmem:[#allocation3 + $0x14] sm:$0xf]
    %v1905 = vld [vmem:[#allocation3 + $0x18] sm:$0xf]
    %v1906 = vld [vmem:[#allocation3 + $0x1c] sm:$0x1]
    %v1908 = vshrl.u32 %v1901, 16
    %v1910 = vrot.slane %v1908, 4
    %v1911 = vshll.u32 %v1901, 16
    %v1913 = vrot.slane %v1911, 5
    %v1914 = vor.u32 %v1910, %v1913
    %v1915 = vrot.slane %v1914, 4
    %v1917 = vshll.u32 %v1902, 16
    %v1919 = vrot.slane %v1917, 5
    %v1920 = vsel %vm735, %v1915, %v1919
    %v1921 = vshrl.u32 %v1902, 16
    %v1923 = vrot.slane %v1921, 4
    %v1924 = vor.u32 %v1923, %v1919
    %v1925 = vrot.slane %v1924, 4
    %v1927 = vshll.u32 %v1903, 16
    %v1929 = vrot.slane %v1927, 5
    %v1930 = vsel %vm735, %v1925, %v1929
    %v1932 = vshrl.u32 %v1904, 16
    %v1934 = vrot.slane %v1932, 4
    %v1935 = vshll.u32 %v1904, 16
    %v1937 = vrot.slane %v1935, 5
    %v1938 = vor.u32 %v1934, %v1937
    %v1939 = vrot.slane %v1938, 4
    %v1941 = vshll.u32 %v1905, 16
    %v1943 = vrot.slane %v1941, 5
    %v1944 = vsel %vm735, %v1939, %v1943
    %v1945 = vshrl.u32 %v1905, 16
    %v1947 = vrot.slane %v1945, 4
    %v1948 = vor.u32 %v1947, %v1943
    %v1949 = vrot.slane %v1948, 4
    %v1951 = vshll.u32 %v1906, 16
    %v1953 = vrot.slane %v1951, 5
    %v1954 = vsel %vm735, %v1949, %v1953
    %s1955 = scalar_lea.vmem [#allocation9], 256
    %v1956 = vld [vmem:[%s1955] sm:$0xf]
    %v1957 = vld [vmem:[%s1955 + $0x4] sm:$0xf]
    %v1958 = vld [vmem:[%s1955 + $0x8] sm:$0xf]
    %v1959 = vld [vmem:[%s1955 + $0xc] sm:$0xf]
    %v1960 = vld [vmem:[%s1955 + $0x10] sm:$0xf]
    %v1961 = vld [vmem:[%s1955 + $0x14] sm:$0xf]
    %v1962 = vld [vmem:[%s1955 + $0x18] sm:$0xf]
    %v1963 = vld [vmem:[%s1955 + $0x1c] sm:$0xf]
    %v1964 = vld [vmem:[%s1955 + $0x20] sm:$0xf]
    %v1965 = vld [vmem:[%s1955 + $0x24] sm:$0xf]
    %v1966 = vld [vmem:[%s1955 + $0x28] sm:$0xf]
    %v1967 = vld [vmem:[%s1955 + $0x2c] sm:$0xf]
    %v1968 = vld [vmem:[%s1955 + $0x30] sm:$0xf]
    %v1969 = vld [vmem:[%s1955 + $0x34] sm:$0xf]
    %v1970 = vld [vmem:[%s1955 + $0x38] sm:$0xf]
    %v1971 = vld [vmem:[%s1955 + $0x3c] sm:$0xf]
    %v1972 = vunpack.c.l.b16 %v1920
    %v1973 = vunpack.c.l.b16 %v1930
    %v1974 = vunpack.c.l.b16 %v1944
    %v1975 = vunpack.c.l.b16 %v1954
    %v1976 = vpack.c.b16 %v1973, %v1972
    %v1977 = vpack.c.b16 %v1975, %v1974
    %v1996 = vunpack.c.l.b16 %v1956
    %v1997 = vunpack.c.l.b16 %v1957
    %v1998 = vunpack.c.l.b16 %v1958
    %v1999 = vunpack.c.l.b16 %v1959
    %v2000 = vunpack.c.l.b16 %v1960
    %v2001 = vunpack.c.l.b16 %v1961
    %v2002 = vunpack.c.l.b16 %v1962
    %v2003 = vunpack.c.l.b16 %v1963
    %v2004 = vunpack.c.l.b16 %v1964
    %v2005 = vunpack.c.l.b16 %v1965
    %v2006 = vunpack.c.l.b16 %v1966
    %v2007 = vunpack.c.l.b16 %v1967
    %v2008 = vunpack.c.l.b16 %v1968
    %v2009 = vunpack.c.l.b16 %v1969
    %v2010 = vunpack.c.l.b16 %v1970
    %v2011 = vunpack.c.l.b16 %v1971
    %v2012 = vpack.c.b16 %v1997, %v1996
    %v2013 = vpack.c.b16 %v1999, %v1998
    %v2014 = vpack.c.b16 %v2001, %v2000
    %v2015 = vpack.c.b16 %v2003, %v2002
    %v2016 = vpack.c.b16 %v2005, %v2004
    %v2017 = vpack.c.b16 %v2007, %v2006
    %v2018 = vpack.c.b16 %v2009, %v2008
    %v2019 = vpack.c.b16 %v2011, %v2010
    %2028 = vmatprep.subr.bf16.mxu0 0
    %2029 = vmatpush1.bf16.msra.mxu0 %v2019
    %2030 = vmatprep.subr.bf16.mxu0 0
    %2031 = vmatpush1.bf16.msra.mxu0 %v2018
    %2032 = vmatprep.subr.bf16.mxu0 0
    %2033 = vmatpush1.bf16.msra.mxu0 %v2017
    %2034 = vmatprep.subr.bf16.mxu0 0
    %2035 = vmatpush1.bf16.msra.mxu0 %v2016
    %2036 = vmatprep.subr.bf16.mxu0 0
    %2037 = vmatpush1.bf16.msra.mxu0 %v2015
    %2038 = vmatprep.subr.bf16.mxu0 0
    %2039 = vmatpush1.bf16.msra.mxu0 %v2014
    %2040 = vmatprep.subr.bf16.mxu0 0
    %2041 = vmatpush1.bf16.msra.mxu0 %v2013
    %2042 = vmatprep.subr.bf16.mxu0 0
    %2043 = vmatpush1.bf16.msra.mxu0 %v2012
    %2044 = vmatprep.subr.bf16.mxu0 0
    %2045 = vmatpush2.bf16.msra.mxu0 0
    %2046 = vmatprep.subr.bf16.mxu0 0
    %2047 = vmatpush2.bf16.msra.mxu0 0
    %2048 = vmatprep.subr.bf16.mxu0 0
    %2049 = vmatpush2.bf16.msra.mxu0 0
    %2050 = vmatprep.subr.bf16.mxu0 0
    %2051 = vmatpush2.bf16.msra.mxu0 0
    %2052 = vmatprep.subr.bf16.mxu0 0
    %2053 = vmatpush2.bf16.msra.mxu0 0
    %2054 = vmatprep.subr.bf16.mxu0 0
    %2055 = vmatpush2.bf16.msra.mxu0 0
    %2056 = vmatprep.subr.bf16.mxu0 0
    %2057 = vmatpush2.bf16.msra.mxu0 0
    %2058 = vmatprep.subr.bf16.mxu0 0
    %2059 = vmatpush2.bf16.msra.mxu0 0
    %2060 = vmatprep.mubr.bf16.mxu0 0
    %2061 = vmatmul.mubr.bf16.gmra.mxu0 %v1976
    %v2062 = vpop.f32.mrf.mxu0
    %v2063 = vadd.f32 0.0, %v2062
    %v2064 = vpop.f32.mrf.mxu0
    %v2065 = vpop.f32.mrf.mxu0
    %v2066 = vadd.f32 0.0, %v2065
    %v2067 = vpop.f32.mrf.mxu0
    %2068 = vmatprep.mubr.bf16.mxu0 0
    %2069 = vmatmul.mubr.bf16.gmra.mxu0 %v1977
    %v2070 = vpop.f32.mrf.mxu0
    %v2071 = vadd.f32 0.0, %v2070
    %v2072 = vpop.f32.mrf.mxu0
    %v2073 = vpop.f32.mrf.mxu0
    %v2074 = vadd.f32 0.0, %v2073
    %v2075 = vpop.f32.mrf.mxu0
    %2076 = vdwg.mxu0
    %v2077 = vadd.f32 %v1897, %v2063
    %v2078 = vadd.f32 %v1898, %v2066
    %v2079 = vadd.f32 %v1899, %v2071
    %v2080 = vadd.f32 %v1900, %v2074
    %v2081 = vld [vmem:[#allocation3 + $0x4] sm:$0xe]
    %v2082 = vld [vmem:[#allocation3 + $0x14] sm:$0xe]
    %v2089 = vrot.slane %v2081, 5
    %v2090 = vrot.slane %v2089, 4
    %v2091 = vrot.slane %v1902, 5
    %v2092 = vsel %vm920, %v2090, %v2091
    %v2093 = vrot.slane %v2091, 4
    %v2094 = vrot.slane %v1903, 5
    %v2095 = vsel %vm920, %v2093, %v2094
    %v2096 = vrot.slane %v2082, 5
    %v2097 = vrot.slane %v2096, 4
    %v2098 = vrot.slane %v1905, 5
    %v2099 = vsel %vm920, %v2097, %v2098
    %v2100 = vrot.slane %v2098, 4
    %v2101 = vrot.slane %v1906, 5
    %v2102 = vsel %vm920, %v2100, %v2101
    %s2103 = scalar_lea.vmem [#allocation9], 320
    %v2104 = vld [vmem:[%s2103] sm:$0xf]
    %v2105 = vld [vmem:[%s2103 + $0x4] sm:$0xf]
    %v2106 = vld [vmem:[%s2103 + $0x8] sm:$0xf]
    %v2107 = vld [vmem:[%s2103 + $0xc] sm:$0xf]
    %v2108 = vld [vmem:[%s2103 + $0x10] sm:$0xf]
    %v2109 = vld [vmem:[%s2103 + $0x14] sm:$0xf]
    %v2110 = vld [vmem:[%s2103 + $0x18] sm:$0xf]
    %v2111 = vld [vmem:[%s2103 + $0x1c] sm:$0xf]
    %v2112 = vld [vmem:[%s2103 + $0x20] sm:$0xf]
    %v2113 = vld [vmem:[%s2103 + $0x24] sm:$0xf]
    %v2114 = vld [vmem:[%s2103 + $0x28] sm:$0xf]
    %v2115 = vld [vmem:[%s2103 + $0x2c] sm:$0xf]
    %v2116 = vld [vmem:[%s2103 + $0x30] sm:$0xf]
    %v2117 = vld [vmem:[%s2103 + $0x34] sm:$0xf]
    %v2118 = vld [vmem:[%s2103 + $0x38] sm:$0xf]
    %v2119 = vld [vmem:[%s2103 + $0x3c] sm:$0xf]
    %v2120 = vunpack.c.l.b16 %v2092
    %v2121 = vunpack.c.l.b16 %v2095
    %v2122 = vunpack.c.l.b16 %v2099
    %v2123 = vunpack.c.l.b16 %v2102
    %v2124 = vpack.c.b16 %v2121, %v2120
    %v2125 = vpack.c.b16 %v2123, %v2122
    %v2144 = vunpack.c.l.b16 %v2104
    %v2145 = vunpack.c.l.b16 %v2105
    %v2146 = vunpack.c.l.b16 %v2106
    %v2147 = vunpack.c.l.b16 %v2107
    %v2148 = vunpack.c.l.b16 %v2108
    %v2149 = vunpack.c.l.b16 %v2109
    %v2150 = vunpack.c.l.b16 %v2110
    %v2151 = vunpack.c.l.b16 %v2111
    %v2152 = vunpack.c.l.b16 %v2112
    %v2153 = vunpack.c.l.b16 %v2113
    %v2154 = vunpack.c.l.b16 %v2114
    %v2155 = vunpack.c.l.b16 %v2115
    %v2156 = vunpack.c.l.b16 %v2116
    %v2157 = vunpack.c.l.b16 %v2117
    %v2158 = vunpack.c.l.b16 %v2118
    %v2159 = vunpack.c.l.b16 %v2119
    %v2160 = vpack.c.b16 %v2145, %v2144
    %v2161 = vpack.c.b16 %v2147, %v2146
    %v2162 = vpack.c.b16 %v2149, %v2148
    %v2163 = vpack.c.b16 %v2151, %v2150
    %v2164 = vpack.c.b16 %v2153, %v2152
    %v2165 = vpack.c.b16 %v2155, %v2154
    %v2166 = vpack.c.b16 %v2157, %v2156
    %v2167 = vpack.c.b16 %v2159, %v2158
    %2176 = vmatprep.subr.bf16.mxu0 0
    %2177 = vmatpush1.bf16.msra.mxu0 %v2167
    %2178 = vmatprep.subr.bf16.mxu0 0
    %2179 = vmatpush1.bf16.msra.mxu0 %v2166
    %2180 = vmatprep.subr.bf16.mxu0 0
    %2181 = vmatpush1.bf16.msra.mxu0 %v2165
    %2182 = vmatprep.subr.bf16.mxu0 0
    %2183 = vmatpush1.bf16.msra.mxu0 %v2164
    %2184 = vmatprep.subr.bf16.mxu0 0
    %2185 = vmatpush1.bf16.msra.mxu0 %v2163
    %2186 = vmatprep.subr.bf16.mxu0 0
    %2187 = vmatpush1.bf16.msra.mxu0 %v2162
    %2188 = vmatprep.subr.bf16.mxu0 0
    %2189 = vmatpush1.bf16.msra.mxu0 %v2161
    %2190 = vmatprep.subr.bf16.mxu0 0
    %2191 = vmatpush1.bf16.msra.mxu0 %v2160
    %2192 = vmatprep.subr.bf16.mxu0 0
    %2193 = vmatpush2.bf16.msra.mxu0 0
    %2194 = vmatprep.subr.bf16.mxu0 0
    %2195 = vmatpush2.bf16.msra.mxu0 0
    %2196 = vmatprep.subr.bf16.mxu0 0
    %2197 = vmatpush2.bf16.msra.mxu0 0
    %2198 = vmatprep.subr.bf16.mxu0 0
    %2199 = vmatpush2.bf16.msra.mxu0 0
    %2200 = vmatprep.subr.bf16.mxu0 0
    %2201 = vmatpush2.bf16.msra.mxu0 0
    %2202 = vmatprep.subr.bf16.mxu0 0
    %2203 = vmatpush2.bf16.msra.mxu0 0
    %2204 = vmatprep.subr.bf16.mxu0 0
    %2205 = vmatpush2.bf16.msra.mxu0 0
    %2206 = vmatprep.subr.bf16.mxu0 0
    %2207 = vmatpush2.bf16.msra.mxu0 0
    %2208 = vmatprep.mubr.bf16.mxu0 0
    %2209 = vmatmul.mubr.bf16.gmra.mxu0 %v2124
    %v2210 = vpop.f32.mrf.mxu0
    %v2211 = vadd.f32 0.0, %v2210
    %v2212 = vpop.f32.mrf.mxu0
    %v2213 = vpop.f32.mrf.mxu0
    %v2214 = vadd.f32 0.0, %v2213
    %v2215 = vpop.f32.mrf.mxu0
    %2216 = vmatprep.mubr.bf16.mxu0 0
    %2217 = vmatmul.mubr.bf16.gmra.mxu0 %v2125
    %v2218 = vpop.f32.mrf.mxu0
    %v2219 = vadd.f32 0.0, %v2218
    %v2220 = vpop.f32.mrf.mxu0
    %v2221 = vpop.f32.mrf.mxu0
    %v2222 = vadd.f32 0.0, %v2221
    %v2223 = vpop.f32.mrf.mxu0
    %2224 = vdwg.mxu0
    %v2225 = vadd.f32 %v2077, %v2211
    %v2226 = vadd.f32 %v2078, %v2214
    %v2227 = vadd.f32 %v2079, %v2219
    %v2228 = vadd.f32 %v2080, %v2222
    %v2229 = vld [vmem:[#allocation3 + $0xc] sm:$0x3]
    %v2230 = vld [vmem:[#allocation3 + $0x1c] sm:$0x3]
    %v2232 = vshrl.u32 %v2081, 16
    %v2234 = vrot.slane %v2232, 5
    %v2235 = vshll.u32 %v2081, 16
    %v2237 = vrot.slane %v2235, 6
    %v2238 = vor.u32 %v2234, %v2237
    %v2239 = vrot.slane %v2238, 4
    %v2240 = vrot.slane %v1921, 5
    %v2241 = vrot.slane %v1917, 6
    %v2242 = vor.u32 %v2240, %v2241
    %v2243 = vsel %vm1065, %v2239, %v2242
    %v2244 = vrot.slane %v2242, 4
    %v2246 = vshrl.u32 %v2229, 16
    %v2248 = vrot.slane %v2246, 5
    %v2249 = vshll.u32 %v2229, 16
    %v2251 = vrot.slane %v2249, 6
    %v2252 = vor.u32 %v2248, %v2251
    %v2253 = vsel %vm1065, %v2244, %v2252
    %v2255 = vshrl.u32 %v2082, 16
    %v2257 = vrot.slane %v2255, 5
    %v2258 = vshll.u32 %v2082, 16
    %v2260 = vrot.slane %v2258, 6
    %v2261 = vor.u32 %v2257, %v2260
    %v2262 = vrot.slane %v2261, 4
    %v2263 = vrot.slane %v1945, 5
    %v2264 = vrot.slane %v1941, 6
    %v2265 = vor.u32 %v2263, %v2264
    %v2266 = vsel %vm1065, %v2262, %v2265
    %v2267 = vrot.slane %v2265, 4
    %v2269 = vshrl.u32 %v2230, 16
    %v2271 = vrot.slane %v2269, 5
    %v2272 = vshll.u32 %v2230, 16
    %v2274 = vrot.slane %v2272, 6
    %v2275 = vor.u32 %v2271, %v2274
    %v2276 = vsel %vm1065, %v2267, %v2275
    %s2277 = scalar_lea.vmem [#allocation9], 384
    %v2278 = vld [vmem:[%s2277] sm:$0xf]
    %v2279 = vld [vmem:[%s2277 + $0x4] sm:$0xf]
    %v2280 = vld [vmem:[%s2277 + $0x8] sm:$0xf]
    %v2281 = vld [vmem:[%s2277 + $0xc] sm:$0xf]
    %v2282 = vld [vmem:[%s2277 + $0x10] sm:$0xf]
    %v2283 = vld [vmem:[%s2277 + $0x14] sm:$0xf]
    %v2284 = vld [vmem:[%s2277 + $0x18] sm:$0xf]
    %v2285 = vld [vmem:[%s2277 + $0x1c] sm:$0xf]
    %v2286 = vld [vmem:[%s2277 + $0x20] sm:$0xf]
    %v2287 = vld [vmem:[%s2277 + $0x24] sm:$0xf]
    %v2288 = vld [vmem:[%s2277 + $0x28] sm:$0xf]
    %v2289 = vld [vmem:[%s2277 + $0x2c] sm:$0xf]
    %v2290 = vld [vmem:[%s2277 + $0x30] sm:$0xf]
    %v2291 = vld [vmem:[%s2277 + $0x34] sm:$0xf]
    %v2292 = vld [vmem:[%s2277 + $0x38] sm:$0xf]
    %v2293 = vld [vmem:[%s2277 + $0x3c] sm:$0xf]
    %v2294 = vunpack.c.l.b16 %v2243
    %v2295 = vunpack.c.l.b16 %v2253
    %v2296 = vunpack.c.l.b16 %v2266
    %v2297 = vunpack.c.l.b16 %v2276
    %v2298 = vpack.c.b16 %v2295, %v2294
    %v2299 = vpack.c.b16 %v2297, %v2296
    %v2318 = vunpack.c.l.b16 %v2278
    %v2319 = vunpack.c.l.b16 %v2279
    %v2320 = vunpack.c.l.b16 %v2280
    %v2321 = vunpack.c.l.b16 %v2281
    %v2322 = vunpack.c.l.b16 %v2282
    %v2323 = vunpack.c.l.b16 %v2283
    %v2324 = vunpack.c.l.b16 %v2284
    %v2325 = vunpack.c.l.b16 %v2285
    %v2326 = vunpack.c.l.b16 %v2286
    %v2327 = vunpack.c.l.b16 %v2287
    %v2328 = vunpack.c.l.b16 %v2288
    %v2329 = vunpack.c.l.b16 %v2289
    %v2330 = vunpack.c.l.b16 %v2290
    %v2331 = vunpack.c.l.b16 %v2291
    %v2332 = vunpack.c.l.b16 %v2292
    %v2333 = vunpack.c.l.b16 %v2293
    %v2334 = vpack.c.b16 %v2319, %v2318
    %v2335 = vpack.c.b16 %v2321, %v2320
    %v2336 = vpack.c.b16 %v2323, %v2322
    %v2337 = vpack.c.b16 %v2325, %v2324
    %v2338 = vpack.c.b16 %v2327, %v2326
    %v2339 = vpack.c.b16 %v2329, %v2328
    %v2340 = vpack.c.b16 %v2331, %v2330
    %v2341 = vpack.c.b16 %v2333, %v2332
    %2350 = vmatprep.subr.bf16.mxu0 0
    %2351 = vmatpush1.bf16.msra.mxu0 %v2341
    %2352 = vmatprep.subr.bf16.mxu0 0
    %2353 = vmatpush1.bf16.msra.mxu0 %v2340
    %2354 = vmatprep.subr.bf16.mxu0 0
    %2355 = vmatpush1.bf16.msra.mxu0 %v2339
    %2356 = vmatprep.subr.bf16.mxu0 0
    %2357 = vmatpush1.bf16.msra.mxu0 %v2338
    %2358 = vmatprep.subr.bf16.mxu0 0
    %2359 = vmatpush1.bf16.msra.mxu0 %v2337
    %2360 = vmatprep.subr.bf16.mxu0 0
    %2361 = vmatpush1.bf16.msra.mxu0 %v2336
    %2362 = vmatprep.subr.bf16.mxu0 0
    %2363 = vmatpush1.bf16.msra.mxu0 %v2335
    %2364 = vmatprep.subr.bf16.mxu0 0
    %2365 = vmatpush1.bf16.msra.mxu0 %v2334
    %2366 = vmatprep.subr.bf16.mxu0 0
    %2367 = vmatpush2.bf16.msra.mxu0 0
    %2368 = vmatprep.subr.bf16.mxu0 0
    %2369 = vmatpush2.bf16.msra.mxu0 0
    %2370 = vmatprep.subr.bf16.mxu0 0
    %2371 = vmatpush2.bf16.msra.mxu0 0
    %2372 = vmatprep.subr.bf16.mxu0 0
    %2373 = vmatpush2.bf16.msra.mxu0 0
    %2374 = vmatprep.subr.bf16.mxu0 0
    %2375 = vmatpush2.bf16.msra.mxu0 0
    %2376 = vmatprep.subr.bf16.mxu0 0
    %2377 = vmatpush2.bf16.msra.mxu0 0
    %2378 = vmatprep.subr.bf16.mxu0 0
    %2379 = vmatpush2.bf16.msra.mxu0 0
    %2380 = vmatprep.subr.bf16.mxu0 0
    %2381 = vmatpush2.bf16.msra.mxu0 0
    %2382 = vmatprep.mubr.bf16.mxu0 0
    %2383 = vmatmul.mubr.bf16.gmra.mxu0 %v2298
    %v2384 = vpop.f32.mrf.mxu0
    %v2385 = vadd.f32 0.0, %v2384
    %v2386 = vpop.f32.mrf.mxu0
    %v2387 = vpop.f32.mrf.mxu0
    %v2388 = vadd.f32 0.0, %v2387
    %v2389 = vpop.f32.mrf.mxu0
    %2390 = vmatprep.mubr.bf16.mxu0 0
    %2391 = vmatmul.mubr.bf16.gmra.mxu0 %v2299
    %v2392 = vpop.f32.mrf.mxu0
    %v2393 = vadd.f32 0.0, %v2392
    %v2394 = vpop.f32.mrf.mxu0
    %v2395 = vpop.f32.mrf.mxu0
    %v2396 = vadd.f32 0.0, %v2395
    %v2397 = vpop.f32.mrf.mxu0
    %2398 = vdwg.mxu0
    %v2399 = vadd.f32 %v2225, %v2385
    %v2400 = vadd.f32 %v2226, %v2388
    %v2401 = vadd.f32 %v2227, %v2393
    %v2402 = vadd.f32 %v2228, %v2396
    %v2403 = vld [vmem:[%s5] sm:$0x1]
    %v2405 = vlaneseq
    %v2406 = vshrl.u32 %v2405, 7
    %v2407 = vsub.s32 0, %v2406
    %v2408 = vrot.slane %v2403, %v2407
    %v2410 = vmul.f32 %v2399, %v2408
    %v2411 = vmul.f32 %v2400, %v2408
    %v2412 = vmul.f32 %v2401, %v2408
    %v2413 = vmul.f32 %v2402, %v2408
    %v2414 = vld [vmem:[%s6] sm:$0x1]
    %v2416 = vlaneseq
    %v2417 = vshrl.u32 %v2416, 7
    %v2418 = vsub.s32 0, %v2417
    %v2419 = vrot.slane %v2414, %v2418
    %v2421 = vadd.f32 %v2410, %v2419
    %v2422 = vadd.f32 %v2411, %v2419
    %v2423 = vadd.f32 %v2412, %v2419
    %v2424 = vadd.f32 %v2413, %v2419
    %v2425 = vadd.f32 %v2421, %v77
    %v2426 = vadd.f32 %v2422, %v78
    %v2427 = vadd.f32 %v2423, %v79
    %v2428 = vadd.f32 %v2424, %v80
    %v2429 = vmax.f32 %v2425, 0.0
    %v2430 = vmax.f32 %v2426, 0.0
    %v2431 = vmax.f32 %v2427, 0.0
    %v2432 = vmax.f32 %v2428, 0.0
    %2433 = vst [vmem:[#allocation10] sm:$0xff] %v2429
    %2434 = vst [vmem:[#allocation10 + $0x8] sm:$0xff] %v2430
    %2435 = vst [vmem:[#allocation10 + $0x10] sm:$0xff] %v2431
    %2436 = vst [vmem:[#allocation10 + $0x18] sm:$0xff] %v2432
    // Predicated region
    $region42: #{tpu_custom_call.1} parent=1 // pred_check
      _
    $region43: #{tpu_custom_call.1} parent=1 // pred_check_branch
      %2438 = sbr.rel (0) target = $region45
    $region44: #{tpu_custom_call.1} parent=1 // pred_region
      %s2440 = ssub.s32 512, 512
      %2441 = vsyncadd [#allocation6], %s2440
      %s2442 = sshll.u32 [#allocation10], 4
      %s2443 = int_to_ptr.vmem [resolvable:$true] %s2442
      %2448 = dma.vmem_to_hbm [thread:$0]  %s2443, 512, %s7, [#allocation6], 128, 128, 8
    $region45: #{tpu_custom_call.1} parent=1 // pred_fallthru
      _
    // Predicated region
    $region46: #{tpu_custom_call.1} parent=1 // pred_check
      _
    $region47: #{tpu_custom_call.1} parent=1 // pred_check_branch
      %2450 = sbr.rel (0) target = $region49
    $region48: #{tpu_custom_call.1} parent=1 // pred_region
      %2451 = dma.done [#allocation6], 512
    $region49: #{tpu_custom_call.1} parent=1 // pred_fallthru
      _
    %2452 = vsyncpa [#allocation5], 1
    %2453 = vsyncpa [#allocation8], 1
    %2454 = vsyncpa [#allocation6], 1

</llo_original>
